<compile_context>
chip_gen: v5e
topology: v5e:2x2
jax: 0.10.0
libtpu: 0.0.40
codegen_flags: <defaults>
</compile_context>

<pallas_src>
import functools

import jax
import jax.numpy as jnp
from jax.experimental import pallas as pl
from jax.experimental.pallas import tpu as pltpu

EPS = 1e-5  # PyTorch nn.LayerNorm default eps


def _layernorm(x, g, b):
    mean = jnp.mean(x, axis=-1, keepdims=True)
    var = jnp.mean(jnp.square(x - mean), axis=-1, keepdims=True)
    return (x - mean) * jax.lax.rsqrt(var + EPS) * g + b


# ----------------------------- Pallas kernel ------------------------------- #

def layer_kernel(x_ref, relb_ref,
                 aln_g_ref, aln_b_ref,                 # attention LayerNorm
                 wqkv_ref,                             # (D, 3*inner) bf16, fused QKV
                 wout_ref, bout_ref,                   # (inner, D) bf16, (1, D) f32
                 fln_g_ref, fln_b_ref,                 # FFN LayerNorm
                 w1_ref, b1_ref, w2_ref, b2_ref,       # MLP weights/biases
                 fin_g_ref, fin_b_ref,                 # final LayerNorm (last layer)
                 o_ref,
                 q_scr, k_scr, v_scr,                  # (H, N, dh) bf16 VMEM scratch
                 *, heads, dim_head, scale, q_tile, apply_final_norm):
    """One transformer layer, one (batch, q-tile) grid step."""
    qt = pl.program_id(1)
    N = x_ref.shape[1]
    inner = heads * dim_head

    # -------- once per batch element: LayerNorm + ONE fused QKV matmul --------
    @pl.when(qt == 0)
    def _():
        x_full = x_ref[0]                                          # (N, D) f32
        xn = _layernorm(x_full, aln_g_ref[...], aln_b_ref[...]).astype(jnp.bfloat16)
        qkv = jnp.dot(xn, wqkv_ref[...],
                      preferred_element_type=jnp.float32)          # (N, 3*inner)
        q = qkv[:, :inner] * scale          # softmax scale folded into q once
        k = qkv[:, inner:2 * inner]
        v = qkv[:, 2 * inner:]
        # Head-major relayout happens once per batch element (amortised over
        # all q-tiles).  Keeping the projection as one MXU-filling matmul beats
        # per-head (D, dim_head) projections that underfill the systolic array.
        q_scr[...] = jnp.transpose(q.reshape(N, heads, dim_head), (1, 0, 2)).astype(jnp.bfloat16)
        k_scr[...] = jnp.transpose(k.reshape(N, heads, dim_head), (1, 0, 2)).astype(jnp.bfloat16)
        v_scr[...] = jnp.transpose(v.reshape(N, heads, dim_head), (1, 0, 2)).astype(jnp.bfloat16)

    # -------- per q-tile: attention + residual, FFN + residual --------
    row0 = pl.multiple_of(qt * q_tile, q_tile)
    x_t = x_ref[0, pl.ds(row0, q_tile), :]                         # (TQ, D) f32
    q_t = q_scr[:, pl.ds(row0, q_tile), :]                         # (H, TQ, dh) bf16

    # NOTE: QK^T / AV contract over dim_head (< MXU depth) so these matmuls
    # underfill the MXU; heads are batched so at least issue count stays low.
    dots = jnp.einsum('hqd,hkd->hqk', q_t, k_scr[...],
                      preferred_element_type=jnp.float32)          # (H, TQ, N) f32
    dots = dots + relb_ref[...][None, :, :]
    # TODO(synk): temporal_mask == 0 -> -inf path; driver calls forward(mask=None).

    m = jnp.max(dots, axis=-1, keepdims=True)
    e = jnp.exp(dots - m)                                          # values <= 1
    s = jnp.sum(e, axis=-1, keepdims=True)                         # (H, TQ, 1)
    # deferred softmax normalisation: scale (H,TQ,dh) context, not (H,TQ,N) probs
    ctx = jnp.einsum('hqk,hkd->hqd', e.astype(jnp.bfloat16), v_scr[...],
                     preferred_element_type=jnp.float32)           # (H, TQ, dh)
    ctx = ctx * pl.reciprocal(s, approx=True)
    ctx = jnp.transpose(ctx, (1, 0, 2)).reshape(q_tile, inner).astype(jnp.bfloat16)
    # TODO(synk): for very long N add an inner online-softmax loop over kv tiles
    # so scores stay (H, TQ, TKV) instead of (H, TQ, N).

    # single fused output projection + bias + residual
    attn_out = (jnp.dot(ctx, wout_ref[...], preferred_element_type=jnp.float32)
                + bout_ref[...] + x_t)                             # (TQ, D) f32

    # ---------------- FFN (pre-norm) ----------------
    yn = _layernorm(attn_out, fln_g_ref[...], fln_b_ref[...]).astype(jnp.bfloat16)
    h = jnp.dot(yn, w1_ref[...], preferred_element_type=jnp.float32) + b1_ref[...]
    # tanh-approx GELU: guaranteed Mosaic lowering and moves the nonlinearity to
    # the EUP slot (review: v5e VALU relief).
    # TODO(synk): nn.GELU() default is exact erf; ~1e-3 deviation vs PyTorch here.
    h = jax.nn.gelu(h, approximate=True)
    y = (jnp.dot(h.astype(jnp.bfloat16), w2_ref[...],
                 preferred_element_type=jnp.float32) + b2_ref[...])
    out = y + attn_out

    # fuse the Transformer's final LayerNorm into the last layer
    if apply_final_norm:
        out = _layernorm(out, fin_g_ref[...], fin_b_ref[...])

    # TODO(synk): D < 128 gives masked partial stores; pad/pack the lane dim for
    # lane-dense stores at real model sizes.
    o_ref[0] = out.astype(o_ref.dtype)


# ------------------------------ JAX wrappers -------------------------------- #

def _const_spec(shape):
    nd = len(shape)
    return pl.BlockSpec(shape, lambda b, q, _nd=nd: (0,) * _nd)


def _pick_q_tile(n):
    for t in (256, 128):
        if n % t == 0:
            return t
    return n   # tiny / ragged N: single q-tile (grid depth degrades gracefully)


def _vmem_limit_bytes():
    # Per-generation VMEM headroom (review: ~100 MiB on v5e/v6e, <= ~56 MiB v7x).
    try:
        cap = pltpu.get_tpu_info().vmem_capacity_bytes
    except Exception:
        cap = 64 * 1024 * 1024      # conservative fallback (v7x-sized)
    return int(min(cap * 0.85, 100 * 1024 * 1024))


def layer_forward(x, attn_p, ffn_p, rel_bias, final_p, *, heads, dim_head,
                  q_tile, apply_final_norm):
    B, N, D = x.shape
    inner = heads * dim_head
    mlp = ffn_p["w1"].shape[1]
    num_q = N // q_tile

    kernel = functools.partial(layer_kernel, heads=heads, dim_head=dim_head,
                               scale=dim_head ** (-0.5), q_tile=q_tile,
                               apply_final_norm=apply_final_norm)

    # Weights use constant index_maps -> fetched once per pallas_call and kept
    # VMEM-resident across all grid steps.
    # TODO(synk): on v7x single-buffer these invariant weight specs
    # (pipeline_mode=pl.Buffered(1)) and/or store them fp8 to halve resident VMEM.
    in_specs = [
        pl.BlockSpec((1, N, D), lambda b, q: (b, 0, 0)),      # x (resident per batch elem)
        pl.BlockSpec((q_tile, N), lambda b, q: (q, 0)),       # rel-bias row tile
        _const_spec((1, D)), _const_spec((1, D)),             # attn LN g/b
        _const_spec((D, 3 * inner)),                          # fused w_qkv
        _const_spec((inner, D)), _const_spec((1, D)),         # w_out, b_out
        _const_spec((1, D)), _const_spec((1, D)),             # ffn LN g/b
        _const_spec((D, mlp)), _const_spec((1, mlp)),         # w1, b1
        _const_spec((mlp, D)), _const_spec((1, D)),           # w2, b2
        _const_spec((1, D)), _const_spec((1, D)),             # final LN g/b
    ]

    return pl.pallas_call(
        kernel,
        out_shape=jax.ShapeDtypeStruct((B, N, D), x.dtype),
        grid=(B, num_q),
        in_specs=in_specs,
        out_specs=pl.BlockSpec((1, q_tile, D), lambda b, q: (b, q, 0)),
        scratch_shapes=[pltpu.VMEM((heads, N, dim_head), jnp.bfloat16),
                        pltpu.VMEM((heads, N, dim_head), jnp.bfloat16),
                        pltpu.VMEM((heads, N, dim_head), jnp.bfloat16)],
        compiler_params=pltpu.CompilerParams(
            dimension_semantics=("parallel", "arbitrary"),    # megacore on batch
            vmem_limit_bytes=_vmem_limit_bytes()),
    )(x,
      rel_bias,
      attn_p["ln_g"], attn_p["ln_b"],
      attn_p["w_qkv"],
      attn_p["w_out"], attn_p["b_out"],
      ffn_p["ln_g"], ffn_p["ln_b"],
      ffn_p["w1"], ffn_p["b1"], ffn_p["w2"], ffn_p["b2"],
      final_p["ln_g"], final_p["ln_b"])


def transformer_forward(x, layers, final, *, heads, dim_head, max_rel_dist):
    """mask=None path of Transformer.forward."""
    assert len(layers) >= 1
    B, N, D = x.shape
    q_tile = _pick_q_tile(N)

    # relative-position index matrix: identical for every layer, built once
    i = jnp.arange(N)[:, None]
    j = jnp.arange(N)[None, :]
    rel = jnp.clip(i - j, -(max_rel_dist - 1), max_rel_dist - 1) + max_rel_dist - 1

    # TODO(synk): hide the ~per-layer weight DMA by fusing all layers into one
    # pallas_call (weights via memory_space=pl.ANY + manual double-buffered
    # make_async_copy) or by cross-call prefetch of layer i+1 weights.
    depth = len(layers)
    for li, (attn_p, ffn_p) in enumerate(layers):
        rel_bias = attn_p["rel_table"][rel, 0].astype(jnp.float32)   # (N, N)
        x = layer_forward(x, attn_p, ffn_p, rel_bias, final,
                          heads=heads, dim_head=dim_head, q_tile=q_tile,
                          apply_final_norm=(li == depth - 1))
    return x


# --------------------------- deterministic params --------------------------- #

def init_params(key, *, dim, depth, heads, dim_head, mlp_dim_ratio, max_rel_dist):
    inner = heads * dim_head
    mlp_dim = mlp_dim_ratio * dim
    layers = []
    for _ in range(depth):
        key, kqkv, ko, kr, k1, k2 = jax.random.split(key, 6)
        attn = dict(
            ln_g=jnp.ones((1, dim), jnp.float32),
            ln_b=jnp.zeros((1, dim), jnp.float32),
            # fused QKV weight (== to_qkv), stored bf16 (MXU operand, f32 accum)
            w_qkv=(0.02 * jax.random.normal(kqkv, (dim, 3 * inner))).astype(jnp.bfloat16),
            w_out=(0.02 * jax.random.normal(ko, (inner, dim))).astype(jnp.bfloat16),
            b_out=jnp.zeros((1, dim), jnp.float32),
            rel_table=0.02 * jax.random.normal(kr, (2 * max_rel_dist - 1, 1),
                                               jnp.float32),
        )
        ffn = dict(
            ln_g=jnp.ones((1, dim), jnp.float32),
            ln_b=jnp.zeros((1, dim), jnp.float32),
            w1=(0.02 * jax.random.normal(k1, (dim, mlp_dim))).astype(jnp.bfloat16),
            b1=jnp.zeros((1, mlp_dim), jnp.float32),
            w2=(0.02 * jax.random.normal(k2, (mlp_dim, dim))).astype(jnp.bfloat16),
            b2=jnp.zeros((1, dim), jnp.float32),
        )
        layers.append((attn, ffn))
    final = dict(ln_g=jnp.ones((1, dim), jnp.float32),
                 ln_b=jnp.zeros((1, dim), jnp.float32))
    return layers, final


if __name__ == "__main__":
    # Small config consistent with Transformer(dim, depth, heads, dim_head, mlp_dim_ratio)
    B, N = 2, 8
    DIM, DEPTH, HEADS, DIM_HEAD, MLP_RATIO = 32, 2, 4, 8, 4
    MAX_REL_DIST = 200  # Attention default

    key = jax.random.PRNGKey(0)
    key, kx = jax.random.split(key)
    x = jax.random.normal(kx, (B, N, DIM), jnp.float32)

    layers, final = init_params(key, dim=DIM, depth=DEPTH, heads=HEADS,
                                dim_head=DIM_HEAD, mlp_dim_ratio=MLP_RATIO,
                                max_rel_dist=MAX_REL_DIST)

    out = transformer_forward(x, layers, final, heads=HEADS, dim_head=DIM_HEAD,
                              max_rel_dist=MAX_REL_DIST)
    jax.block_until_ready(out)
    assert out.shape == (B, N, DIM)
    assert bool(jnp.all(jnp.isfinite(out)))
    print("KERNEL_OK")
</pallas_src>

<mosaic_0001>
module attributes {stable_mosaic.version = 11 : i64} {
  func.func @layer_kernel(%arg0: i32, %arg1: i32, %arg2: memref<1x8x32xf32, #tpu.memory_space<vmem>>, %arg3: memref<8x8xf32, #tpu.memory_space<vmem>>, %arg4: memref<1x32xf32, #tpu.memory_space<vmem>>, %arg5: memref<1x32xf32, #tpu.memory_space<vmem>>, %arg6: memref<32x96xbf16, #tpu.memory_space<vmem>>, %arg7: memref<32x32xbf16, #tpu.memory_space<vmem>>, %arg8: memref<1x32xf32, #tpu.memory_space<vmem>>, %arg9: memref<1x32xf32, #tpu.memory_space<vmem>>, %arg10: memref<1x32xf32, #tpu.memory_space<vmem>>, %arg11: memref<32x128xbf16, #tpu.memory_space<vmem>>, %arg12: memref<1x128xf32, #tpu.memory_space<vmem>>, %arg13: memref<128x32xbf16, #tpu.memory_space<vmem>>, %arg14: memref<1x32xf32, #tpu.memory_space<vmem>>, %arg15: memref<1x32xf32, #tpu.memory_space<vmem>>, %arg16: memref<1x32xf32, #tpu.memory_space<vmem>>, %arg17: memref<1x8x32xf32, #tpu.memory_space<vmem>>, %arg18: memref<4x8x8xbf16, #tpu.memory_space<vmem>>, %arg19: memref<4x8x8xbf16, #tpu.memory_space<vmem>>, %arg20: memref<4x8x8xbf16, #tpu.memory_space<vmem>>) attributes {dimension_semantics = [#tpu.dimension_semantics<parallel>, #tpu.dimension_semantics<arbitrary>], iteration_bounds = array<i64: 2, 1>, scalar_prefetch = 0 : i64, scratch_operands = 3 : i64, tpu.core_type = #tpu.core_type<tc>, window_params = [{transform_indices = @transform_0, window_bounds = array<i64: 1, 8, 32>}, {transform_indices = @transform_1, window_bounds = array<i64: 8, 8>}, {pipeline_mode = #tpu.pipeline_mode<synchronous>, transform_indices = @transform_2, window_bounds = array<i64: 1, 32>}, {pipeline_mode = #tpu.pipeline_mode<synchronous>, transform_indices = @transform_3, window_bounds = array<i64: 1, 32>}, {pipeline_mode = #tpu.pipeline_mode<synchronous>, transform_indices = @transform_4, window_bounds = array<i64: 32, 96>}, {pipeline_mode = #tpu.pipeline_mode<synchronous>, transform_indices = @transform_5, window_bounds = array<i64: 32, 32>}, {pipeline_mode = #tpu.pipeline_mode<synchronous>, transform_indices = @transform_6, window_bounds = array<i64: 1, 32>}, {pipeline_mode = #tpu.pipeline_mode<synchronous>, transform_indices = @transform_7, window_bounds = array<i64: 1, 32>}, {pipeline_mode = #tpu.pipeline_mode<synchronous>, transform_indices = @transform_8, window_bounds = array<i64: 1, 32>}, {pipeline_mode = #tpu.pipeline_mode<synchronous>, transform_indices = @transform_9, window_bounds = array<i64: 32, 128>}, {pipeline_mode = #tpu.pipeline_mode<synchronous>, transform_indices = @transform_10, window_bounds = array<i64: 1, 128>}, {pipeline_mode = #tpu.pipeline_mode<synchronous>, transform_indices = @transform_11, window_bounds = array<i64: 128, 32>}, {pipeline_mode = #tpu.pipeline_mode<synchronous>, transform_indices = @transform_12, window_bounds = array<i64: 1, 32>}, {pipeline_mode = #tpu.pipeline_mode<synchronous>, transform_indices = @transform_13, window_bounds = array<i64: 1, 32>}, {pipeline_mode = #tpu.pipeline_mode<synchronous>, transform_indices = @transform_14, window_bounds = array<i64: 1, 32>}, {transform_indices = @transform_15, window_bounds = array<i64: 1, 8, 32>}]} {
    %c0_i32 = arith.constant 0 : i32
    %0 = arith.cmpi eq, %arg1, %c0_i32 : i32
    %1 = arith.extui %0 : i1 to i32
    %c0_i32_0 = arith.constant 0 : i32
    %2 = arith.cmpi ne, %1, %c0_i32_0 : i32
    scf.if %2 {
      %c0_46 = arith.constant 0 : index
      %c0_47 = arith.constant 0 : index
      %c0_48 = arith.constant 0 : index
      %91 = vector.load %arg2[%c0_46, %c0_47, %c0_48] : memref<1x8x32xf32, #tpu.memory_space<vmem>>, vector<1x8x32xf32>
      %92 = vector.shape_cast %91 : vector<1x8x32xf32> to vector<8x32xf32>
      %c0_49 = arith.constant 0 : index
      %c0_50 = arith.constant 0 : index
      %93 = vector.load %arg4[%c0_49, %c0_50] : memref<1x32xf32, #tpu.memory_space<vmem>>, vector<1x32xf32>
      %c0_51 = arith.constant 0 : index
      %c0_52 = arith.constant 0 : index
      %94 = vector.load %arg5[%c0_51, %c0_52] : memref<1x32xf32, #tpu.memory_space<vmem>>, vector<1x32xf32>
      %cst_53 = arith.constant dense<0.000000e+00> : vector<8xf32>
      %95 = vector.multi_reduction <add>, %92, %cst_53 [1] : vector<8x32xf32> to vector<8xf32>
      %96 = vector.shape_cast %95 : vector<8xf32> to vector<8x1xf32>
      %cst_54 = arith.constant 3.200000e+01 : f32
      %97 = vector.broadcast %cst_54 : f32 to vector<8x1xf32>
      %98 = arith.divf %96, %97 : vector<8x1xf32>
      %99 = vector.broadcast %98 : vector<8x1xf32> to vector<8x32xf32>
      %100 = arith.subf %92, %99 : vector<8x32xf32>
      %101 = arith.mulf %100, %100 : vector<8x32xf32>
      %cst_55 = arith.constant dense<0.000000e+00> : vector<8xf32>
      %102 = vector.multi_reduction <add>, %101, %cst_55 [1] : vector<8x32xf32> to vector<8xf32>
      %103 = vector.shape_cast %102 : vector<8xf32> to vector<8x1xf32>
      %cst_56 = arith.constant 3.200000e+01 : f32
      %104 = vector.broadcast %cst_56 : f32 to vector<8x1xf32>
      %105 = arith.divf %103, %104 : vector<8x1xf32>
      %106 = vector.broadcast %98 : vector<8x1xf32> to vector<8x32xf32>
      %107 = arith.subf %92, %106 : vector<8x32xf32>
      %cst_57 = arith.constant 9.99999974E-6 : f32
      %108 = vector.broadcast %cst_57 : f32 to vector<8x1xf32>
      %109 = arith.addf %105, %108 : vector<8x1xf32>
      %110 = math.rsqrt %109 : vector<8x1xf32>
      %111 = vector.broadcast %110 : vector<8x1xf32> to vector<8x32xf32>
      %112 = arith.mulf %107, %111 : vector<8x32xf32>
      %113 = vector.broadcast %93 : vector<1x32xf32> to vector<8x32xf32>
      %114 = arith.mulf %112, %113 : vector<8x32xf32>
      %115 = vector.broadcast %94 : vector<1x32xf32> to vector<8x32xf32>
      %116 = arith.addf %114, %115 : vector<8x32xf32>
      %117 = arith.truncf %116 : vector<8x32xf32> to vector<8x32xbf16>
      %c0_58 = arith.constant 0 : index
      %c0_59 = arith.constant 0 : index
      %118 = vector.load %arg6[%c0_58, %c0_59] : memref<32x96xbf16, #tpu.memory_space<vmem>>, vector<32x96xbf16>
      %cst_60 = arith.constant dense<0.000000e+00> : vector<8x96xf32>
      %119 = tpu.matmul %117, %118, %cst_60 {dimension_numbers = #tpu.dot_dimension_numbers<[1], [0], [0], [1], [0, 0, 1, 1], [], []>} : vector<8x32xbf16>, vector<32x96xbf16>, vector<8x96xf32> -> vector<8x96xf32>
      %120 = vector.extract_strided_slice %119 {offsets = [0, 0], sizes = [8, 32], strides = [1, 1]} : vector<8x96xf32> to vector<8x32xf32>
      %cst_61 = arith.constant 0.353553385 : f32
      %121 = vector.broadcast %cst_61 : f32 to vector<8x32xf32>
      %122 = arith.mulf %120, %121 : vector<8x32xf32>
      %123 = vector.extract_strided_slice %119 {offsets = [0, 32], sizes = [8, 32], strides = [1, 1]} : vector<8x96xf32> to vector<8x32xf32>
      %124 = vector.extract_strided_slice %119 {offsets = [0, 64], sizes = [8, 32], strides = [1, 1]} : vector<8x96xf32> to vector<8x32xf32>
      %125 = vector.shape_cast %122 : vector<8x32xf32> to vector<8x4x8xf32>
      %126 = tpu.transpose %125, [1, 0, 2] : vector<8x4x8xf32> -> vector<4x8x8xf32>
      %127 = arith.truncf %126 : vector<4x8x8xf32> to vector<4x8x8xbf16>
      %c0_62 = arith.constant 0 : index
      %c0_63 = arith.constant 0 : index
      %c0_64 = arith.constant 0 : index
      %128 = vector.load %arg18[%c0_62, %c0_63, %c0_64] : memref<4x8x8xbf16, #tpu.memory_space<vmem>>, vector<4x8x8xbf16>
      tpu.vector_store %arg18[%c0_62, %c0_63, %c0_64], %127 {strides = array<i32>} : memref<4x8x8xbf16, #tpu.memory_space<vmem>>, vector<4x8x8xbf16>,
      %129 = vector.shape_cast %123 : vector<8x32xf32> to vector<8x4x8xf32>
      %130 = tpu.transpose %129, [1, 0, 2] : vector<8x4x8xf32> -> vector<4x8x8xf32>
      %131 = arith.truncf %130 : vector<4x8x8xf32> to vector<4x8x8xbf16>
      %c0_65 = arith.constant 0 : index
      %c0_66 = arith.constant 0 : index
      %c0_67 = arith.constant 0 : index
      %132 = vector.load %arg19[%c0_65, %c0_66, %c0_67] : memref<4x8x8xbf16, #tpu.memory_space<vmem>>, vector<4x8x8xbf16>
      tpu.vector_store %arg19[%c0_65, %c0_66, %c0_67], %131 {strides = array<i32>} : memref<4x8x8xbf16, #tpu.memory_space<vmem>>, vector<4x8x8xbf16>,
      %133 = vector.shape_cast %124 : vector<8x32xf32> to vector<8x4x8xf32>
      %134 = tpu.transpose %133, [1, 0, 2] : vector<8x4x8xf32> -> vector<4x8x8xf32>
      %135 = arith.truncf %134 : vector<4x8x8xf32> to vector<4x8x8xbf16>
      %c0_68 = arith.constant 0 : index
      %c0_69 = arith.constant 0 : index
      %c0_70 = arith.constant 0 : index
      %136 = vector.load %arg20[%c0_68, %c0_69, %c0_70] : memref<4x8x8xbf16, #tpu.memory_space<vmem>>, vector<4x8x8xbf16>
      tpu.vector_store %arg20[%c0_68, %c0_69, %c0_70], %135 {strides = array<i32>} : memref<4x8x8xbf16, #tpu.memory_space<vmem>>, vector<4x8x8xbf16>,
    } else {
    }
    %c8_i32 = arith.constant 8 : i32
    %3 = arith.muli %arg1, %c8_i32 : i32
    %4 = tpu.assume_multiple %3, 8 : i32
    %c0 = arith.constant 0 : index
    %5 = arith.index_cast %4 : i32 to index
    %c0_1 = arith.constant 0 : index
    %6 = vector.load %arg2[%c0, %5, %c0_1] : memref<1x8x32xf32, #tpu.memory_space<vmem>>, vector<1x8x32xf32>
    %7 = vector.shape_cast %6 : vector<1x8x32xf32> to vector<8x32xf32>
    %c0_2 = arith.constant 0 : index
    %8 = arith.index_cast %4 : i32 to index
    %c0_3 = arith.constant 0 : index
    %9 = vector.load %arg18[%c0_2, %8, %c0_3] : memref<4x8x8xbf16, #tpu.memory_space<vmem>>, vector<4x8x8xbf16>
    %c0_4 = arith.constant 0 : index
    %c0_5 = arith.constant 0 : index
    %c0_6 = arith.constant 0 : index
    %10 = vector.load %arg19[%c0_4, %c0_5, %c0_6] : memref<4x8x8xbf16, #tpu.memory_space<vmem>>, vector<4x8x8xbf16>
    "tpu.trace_start"() <{level = 10 : i32, message = "hqd,hkd->hqk"}> : () -> ()
    %cst = arith.constant dense<0.000000e+00> : vector<4x8x8xf32>
    %11 = tpu.matmul %9, %10, %cst {dimension_numbers = #tpu.dot_dimension_numbers<[2], [2], [1], [1], [0, 0, 0, 1, 1, 1], [0], [0]>} : vector<4x8x8xbf16>, vector<4x8x8xbf16>, vector<4x8x8xf32> -> vector<4x8x8xf32>
    "tpu.trace_stop"() : () -> ()
    %c0_7 = arith.constant 0 : index
    %c0_8 = arith.constant 0 : index
    %12 = vector.load %arg3[%c0_7, %c0_8] : memref<8x8xf32, #tpu.memory_space<vmem>>, vector<8x8xf32>
    %13 = vector.shape_cast %12 : vector<8x8xf32> to vector<1x8x8xf32>
    %14 = vector.broadcast %13 : vector<1x8x8xf32> to vector<4x8x8xf32>
    %15 = arith.addf %11, %14 : vector<4x8x8xf32>
    %cst_9 = arith.constant dense<0xFF800000> : vector<4x8xf32>
    %16 = vector.multi_reduction <maximumf>, %15, %cst_9 [2] : vector<4x8x8xf32> to vector<4x8xf32>
    %17 = vector.shape_cast %16 : vector<4x8xf32> to vector<4x8x1xf32>
    %18 = vector.broadcast %17 : vector<4x8x1xf32> to vector<4x8x8xf32>
    %19 = arith.subf %15, %18 : vector<4x8x8xf32>
    %20 = math.exp %19 : vector<4x8x8xf32>
    %cst_10 = arith.constant dense<0.000000e+00> : vector<4x8xf32>
    %21 = vector.multi_reduction <add>, %20, %cst_10 [2] : vector<4x8x8xf32> to vector<4x8xf32>
    %22 = vector.shape_cast %21 : vector<4x8xf32> to vector<4x8x1xf32>
    %23 = arith.truncf %20 : vector<4x8x8xf32> to vector<4x8x8xbf16>
    %c0_11 = arith.constant 0 : index
    %c0_12 = arith.constant 0 : index
    %c0_13 = arith.constant 0 : index
    %24 = vector.load %arg20[%c0_11, %c0_12, %c0_13] : memref<4x8x8xbf16, #tpu.memory_space<vmem>>, vector<4x8x8xbf16>
    "tpu.trace_start"() <{level = 10 : i32, message = "hqk,hkd->hqd"}> : () -> ()
    %cst_14 = arith.constant dense<0.000000e+00> : vector<4x8x8xf32>
    %25 = tpu.matmul %23, %24, %cst_14 {dimension_numbers = #tpu.dot_dimension_numbers<[2], [1], [1], [2], [0, 0, 0, 1, 1, 2], [0], [0]>} : vector<4x8x8xbf16>, vector<4x8x8xbf16>, vector<4x8x8xf32> -> vector<4x8x8xf32>
    "tpu.trace_stop"() : () -> ()
    %26 = tpu.reciprocal %22 {approx = true} : vector<4x8x1xf32> -> vector<4x8x1xf32>
    %27 = vector.broadcast %26 : vector<4x8x1xf32> to vector<4x8x8xf32>
    %28 = arith.mulf %25, %27 : vector<4x8x8xf32>
    %29 = tpu.transpose %28, [1, 0, 2] : vector<4x8x8xf32> -> vector<8x4x8xf32>
    %30 = vector.shape_cast %29 : vector<8x4x8xf32> to vector<8x32xf32>
    %31 = arith.truncf %30 : vector<8x32xf32> to vector<8x32xbf16>
    %c0_15 = arith.constant 0 : index
    %c0_16 = arith.constant 0 : index
    %32 = vector.load %arg7[%c0_15, %c0_16] : memref<32x32xbf16, #tpu.memory_space<vmem>>, vector<32x32xbf16>
    %cst_17 = arith.constant dense<0.000000e+00> : vector<8x32xf32>
    %33 = tpu.matmul %31, %32, %cst_17 {dimension_numbers = #tpu.dot_dimension_numbers<[1], [0], [0], [1], [0, 0, 1, 1], [], []>} : vector<8x32xbf16>, vector<32x32xbf16>, vector<8x32xf32> -> vector<8x32xf32>
    %c0_18 = arith.constant 0 : index
    %c0_19 = arith.constant 0 : index
    %34 = vector.load %arg8[%c0_18, %c0_19] : memref<1x32xf32, #tpu.memory_space<vmem>>, vector<1x32xf32>
    %35 = vector.broadcast %34 : vector<1x32xf32> to vector<8x32xf32>
    %36 = arith.addf %33, %35 : vector<8x32xf32>
    %37 = arith.addf %36, %7 : vector<8x32xf32>
    %c0_20 = arith.constant 0 : index
    %c0_21 = arith.constant 0 : index
    %38 = vector.load %arg9[%c0_20, %c0_21] : memref<1x32xf32, #tpu.memory_space<vmem>>, vector<1x32xf32>
    %c0_22 = arith.constant 0 : index
    %c0_23 = arith.constant 0 : index
    %39 = vector.load %arg10[%c0_22, %c0_23] : memref<1x32xf32, #tpu.memory_space<vmem>>, vector<1x32xf32>
    %cst_24 = arith.constant dense<0.000000e+00> : vector<8xf32>
    %40 = vector.multi_reduction <add>, %37, %cst_24 [1] : vector<8x32xf32> to vector<8xf32>
    %41 = vector.shape_cast %40 : vector<8xf32> to vector<8x1xf32>
    %cst_25 = arith.constant 3.200000e+01 : f32
    %42 = vector.broadcast %cst_25 : f32 to vector<8x1xf32>
    %43 = arith.divf %41, %42 : vector<8x1xf32>
    %44 = vector.broadcast %43 : vector<8x1xf32> to vector<8x32xf32>
    %45 = arith.subf %37, %44 : vector<8x32xf32>
    %46 = arith.mulf %45, %45 : vector<8x32xf32>
    %cst_26 = arith.constant dense<0.000000e+00> : vector<8xf32>
    %47 = vector.multi_reduction <add>, %46, %cst_26 [1] : vector<8x32xf32> to vector<8xf32>
    %48 = vector.shape_cast %47 : vector<8xf32> to vector<8x1xf32>
    %cst_27 = arith.constant 3.200000e+01 : f32
    %49 = vector.broadcast %cst_27 : f32 to vector<8x1xf32>
    %50 = arith.divf %48, %49 : vector<8x1xf32>
    %51 = vector.broadcast %43 : vector<8x1xf32> to vector<8x32xf32>
    %52 = arith.subf %37, %51 : vector<8x32xf32>
    %cst_28 = arith.constant 9.99999974E-6 : f32
    %53 = vector.broadcast %cst_28 : f32 to vector<8x1xf32>
    %54 = arith.addf %50, %53 : vector<8x1xf32>
    %55 = math.rsqrt %54 : vector<8x1xf32>
    %56 = vector.broadcast %55 : vector<8x1xf32> to vector<8x32xf32>
    %57 = arith.mulf %52, %56 : vector<8x32xf32>
    %58 = vector.broadcast %38 : vector<1x32xf32> to vector<8x32xf32>
    %59 = arith.mulf %57, %58 : vector<8x32xf32>
    %60 = vector.broadcast %39 : vector<1x32xf32> to vector<8x32xf32>
    %61 = arith.addf %59, %60 : vector<8x32xf32>
    %62 = arith.truncf %61 : vector<8x32xf32> to vector<8x32xbf16>
    %c0_29 = arith.constant 0 : index
    %c0_30 = arith.constant 0 : index
    %63 = vector.load %arg11[%c0_29, %c0_30] : memref<32x128xbf16, #tpu.memory_space<vmem>>, vector<32x128xbf16>
    %cst_31 = arith.constant dense<0.000000e+00> : vector<8x128xf32>
    %64 = tpu.matmul %62, %63, %cst_31 {dimension_numbers = #tpu.dot_dimension_numbers<[1], [0], [0], [1], [0, 0, 1, 1], [], []>} : vector<8x32xbf16>, vector<32x128xbf16>, vector<8x128xf32> -> vector<8x128xf32>
    %c0_32 = arith.constant 0 : index
    %c0_33 = arith.constant 0 : index
    %65 = vector.load %arg12[%c0_32, %c0_33] : memref<1x128xf32, #tpu.memory_space<vmem>>, vector<1x128xf32>
    %66 = vector.broadcast %65 : vector<1x128xf32> to vector<8x128xf32>
    %67 = arith.addf %64, %66 : vector<8x128xf32>
    %68 = arith.mulf %67, %67 : vector<8x128xf32>
    %69 = arith.mulf %67, %68 : vector<8x128xf32>
    %cst_34 = arith.constant 4.471500e-02 : f32
    %70 = vector.broadcast %cst_34 : f32 to vector<8x128xf32>
    %71 = arith.mulf %70, %69 : vector<8x128xf32>
    %72 = arith.addf %67, %71 : vector<8x128xf32>
    %cst_35 = arith.constant 0.797884583 : f32
    %73 = vector.broadcast %cst_35 : f32 to vector<8x128xf32>
    %74 = arith.mulf %73, %72 : vector<8x128xf32>
    %75 = math.tanh %74 : vector<8x128xf32>
    %cst_36 = arith.constant 1.000000e+00 : f32
    %76 = vector.broadcast %cst_36 : f32 to vector<8x128xf32>
    %77 = arith.addf %76, %75 : vector<8x128xf32>
    %cst_37 = arith.constant 5.000000e-01 : f32
    %78 = vector.broadcast %cst_37 : f32 to vector<8x128xf32>
    %79 = arith.mulf %78, %77 : vector<8x128xf32>
    %80 = arith.mulf %67, %79 : vector<8x128xf32>
    %81 = arith.truncf %80 : vector<8x128xf32> to vector<8x128xbf16>
    %c0_38 = arith.constant 0 : index
    %c0_39 = arith.constant 0 : index
    %82 = vector.load %arg13[%c0_38, %c0_39] : memref<128x32xbf16, #tpu.memory_space<vmem>>, vector<128x32xbf16>
    %cst_40 = arith.constant dense<0.000000e+00> : vector<8x32xf32>
    %83 = tpu.matmul %81, %82, %cst_40 {dimension_numbers = #tpu.dot_dimension_numbers<[1], [0], [0], [1], [0, 0, 1, 1], [], []>} : vector<8x128xbf16>, vector<128x32xbf16>, vector<8x32xf32> -> vector<8x32xf32>
    %c0_41 = arith.constant 0 : index
    %c0_42 = arith.constant 0 : index
    %84 = vector.load %arg14[%c0_41, %c0_42] : memref<1x32xf32, #tpu.memory_space<vmem>>, vector<1x32xf32>
    %85 = vector.broadcast %84 : vector<1x32xf32> to vector<8x32xf32>
    %86 = arith.addf %83, %85 : vector<8x32xf32>
    %87 = arith.addf %86, %37 : vector<8x32xf32>
    %c0_43 = arith.constant 0 : index
    %c0_44 = arith.constant 0 : index
    %c0_45 = arith.constant 0 : index
    %88 = vector.load %arg17[%c0_43, %c0_44, %c0_45] : memref<1x8x32xf32, #tpu.memory_space<vmem>>, vector<1x8x32xf32>
    %89 = vector.shape_cast %88 : vector<1x8x32xf32> to vector<8x32xf32>
    %90 = vector.shape_cast %87 : vector<8x32xf32> to vector<1x8x32xf32>
    tpu.vector_store %arg17[%c0_43, %c0_44, %c0_45], %90 {strides = array<i32>} : memref<1x8x32xf32, #tpu.memory_space<vmem>>, vector<1x8x32xf32>,
    return
  }
  func.func @transform_0(%arg0: i32, %arg1: i32) -> (i32, i32, i32) {
    %c0_i32 = arith.constant 0 : i32
    %c0_i32_0 = arith.constant 0 : i32
    %c0_i32_1 = arith.constant 0 : i32
    return %arg0, %c0_i32, %c0_i32_0 : i32, i32, i32
  }
  func.func @transform_1(%arg0: i32, %arg1: i32) -> (i32, i32) {
    %c0_i32 = arith.constant 0 : i32
    %c0_i32_0 = arith.constant 0 : i32
    return %arg1, %c0_i32 : i32, i32
  }
  func.func @transform_2(%arg0: i32, %arg1: i32) -> (i32, i32) {
    %c0_i32 = arith.constant 0 : i32
    %c0_i32_0 = arith.constant 0 : i32
    %c0_i32_1 = arith.constant 0 : i32
    return %c0_i32, %c0_i32_0 : i32, i32
  }
  func.func @transform_3(%arg0: i32, %arg1: i32) -> (i32, i32) {
    %c0_i32 = arith.constant 0 : i32
    %c0_i32_0 = arith.constant 0 : i32
    %c0_i32_1 = arith.constant 0 : i32
    return %c0_i32, %c0_i32_0 : i32, i32
  }
  func.func @transform_4(%arg0: i32, %arg1: i32) -> (i32, i32) {
    %c0_i32 = arith.constant 0 : i32
    %c0_i32_0 = arith.constant 0 : i32
    %c0_i32_1 = arith.constant 0 : i32
    return %c0_i32, %c0_i32_0 : i32, i32
  }
  func.func @transform_5(%arg0: i32, %arg1: i32) -> (i32, i32) {
    %c0_i32 = arith.constant 0 : i32
    %c0_i32_0 = arith.constant 0 : i32
    %c0_i32_1 = arith.constant 0 : i32
    return %c0_i32, %c0_i32_0 : i32, i32
  }
  func.func @transform_6(%arg0: i32, %arg1: i32) -> (i32, i32) {
    %c0_i32 = arith.constant 0 : i32
    %c0_i32_0 = arith.constant 0 : i32
    %c0_i32_1 = arith.constant 0 : i32
    return %c0_i32, %c0_i32_0 : i32, i32
  }
  func.func @transform_7(%arg0: i32, %arg1: i32) -> (i32, i32) {
    %c0_i32 = arith.constant 0 : i32
    %c0_i32_0 = arith.constant 0 : i32
    %c0_i32_1 = arith.constant 0 : i32
    return %c0_i32, %c0_i32_0 : i32, i32
  }
  func.func @transform_8(%arg0: i32, %arg1: i32) -> (i32, i32) {
    %c0_i32 = arith.constant 0 : i32
    %c0_i32_0 = arith.constant 0 : i32
    %c0_i32_1 = arith.constant 0 : i32
    return %c0_i32, %c0_i32_0 : i32, i32
  }
  func.func @transform_9(%arg0: i32, %arg1: i32) -> (i32, i32) {
    %c0_i32 = arith.constant 0 : i32
    %c0_i32_0 = arith.constant 0 : i32
    %c0_i32_1 = arith.constant 0 : i32
    return %c0_i32, %c0_i32_0 : i32, i32
  }
  func.func @transform_10(%arg0: i32, %arg1: i32) -> (i32, i32) {
    %c0_i32 = arith.constant 0 : i32
    %c0_i32_0 = arith.constant 0 : i32
    %c0_i32_1 = arith.constant 0 : i32
    return %c0_i32, %c0_i32_0 : i32, i32
  }
  func.func @transform_11(%arg0: i32, %arg1: i32) -> (i32, i32) {
    %c0_i32 = arith.constant 0 : i32
    %c0_i32_0 = arith.constant 0 : i32
    %c0_i32_1 = arith.constant 0 : i32
    return %c0_i32, %c0_i32_0 : i32, i32
  }
  func.func @transform_12(%arg0: i32, %arg1: i32) -> (i32, i32) {
    %c0_i32 = arith.constant 0 : i32
    %c0_i32_0 = arith.constant 0 : i32
    %c0_i32_1 = arith.constant 0 : i32
    return %c0_i32, %c0_i32_0 : i32, i32
  }
  func.func @transform_13(%arg0: i32, %arg1: i32) -> (i32, i32) {
    %c0_i32 = arith.constant 0 : i32
    %c0_i32_0 = arith.constant 0 : i32
    %c0_i32_1 = arith.constant 0 : i32
    return %c0_i32, %c0_i32_0 : i32, i32
  }
  func.func @transform_14(%arg0: i32, %arg1: i32) -> (i32, i32) {
    %c0_i32 = arith.constant 0 : i32
    %c0_i32_0 = arith.constant 0 : i32
    %c0_i32_1 = arith.constant 0 : i32
    return %c0_i32, %c0_i32_0 : i32, i32
  }
  func.func @transform_15(%arg0: i32, %arg1: i32) -> (i32, i32, i32) {
    %c0_i32 = arith.constant 0 : i32
    %c0_i32_0 = arith.constant 0 : i32
    return %arg0, %arg1, %c0_i32 : i32, i32, i32
  }
}

</mosaic_0001>

<llo_original>
// kernel: tpu_custom_call.1
$region0: #{tpu_custom_call.1}
  #allocation0 [shape = 'u32[]', space=smem, size = 0x4, offset = 0x4, fixed_abs, tag = 'smem constant byte address 0x4 - core index']
  #allocation1 [shape = 'u32[72,128]{1,0:T(1,128)}', space=vmem, size = 0x9000, scoped, tag = 'internal scratch']
  #allocation2 [shape = 'bf16[4,8,8]{2,1,0:T(8,128)(2,1)}', space=vmem, size = 0x2000, scoped, tag = 'scratch operand']
  #allocation3 [shape = 'bf16[4,8,8]{2,1,0:T(8,128)(2,1)}', space=vmem, size = 0x2000, scoped, tag = 'scratch operand']
  #allocation4 [shape = 'bf16[4,8,8]{2,1,0:T(8,128)(2,1)}', space=vmem, size = 0x2000, scoped, tag = 'scratch operand']
  %s0 = inlined_call_operand.vmem [shape: f32[2,8,32], index: 0, kind: input, shape index: {}]
  %s1 = inlined_call_operand.vmem [shape: f32[8,8], index: 1, kind: input, shape index: {}]
  %s2 = inlined_call_operand.vmem [shape: f32[1,32], index: 2, kind: input, shape index: {}]
  %s3 = inlined_call_operand.vmem [shape: f32[1,32], index: 3, kind: input, shape index: {}]
  %s4 = inlined_call_operand.vmem [shape: bf16[32,96], index: 4, kind: input, shape index: {}]
  %s5 = inlined_call_operand.vmem [shape: bf16[32,32], index: 5, kind: input, shape index: {}]
  %s6 = inlined_call_operand.vmem [shape: f32[1,32], index: 6, kind: input, shape index: {}]
  %s7 = inlined_call_operand.vmem [shape: f32[1,32], index: 7, kind: input, shape index: {}]
  %s8 = inlined_call_operand.vmem [shape: f32[1,32], index: 8, kind: input, shape index: {}]
  %s9 = inlined_call_operand.vmem [shape: bf16[32,128], index: 9, kind: input, shape index: {}]
  %s10 = inlined_call_operand.vmem [shape: f32[1,128], index: 10, kind: input, shape index: {}]
  %s11 = inlined_call_operand.vmem [shape: bf16[128,32], index: 11, kind: input, shape index: {}]
  %s12 = inlined_call_operand.vmem [shape: f32[1,32], index: 12, kind: input, shape index: {}]
  %s13 = inlined_call_operand.vmem [shape: f32[1,32], index: 13, kind: input, shape index: {}]
  %s14 = inlined_call_operand.vmem [shape: f32[1,32], index: 14, kind: input, shape index: {}]
  %s15 = inlined_call_operand.hbm [shape: f32[2,8,32], index: 15, kind: output, shape index: {}]
  %s16 = sld [smem:[#allocation0]]
  $region97: #{tpu_custom_call.1} parent=0
    _
  %s18 = ssub.s32 1, %s16
  %s19 = scalar_select 0, %s18, %s16
  $region1: #{tpu_custom_call.1} parent=0
    #allocation5 [shape = 'u8[8192]{0}', space=vmem, size = 0x2000, scoped, tag = 'output window, operand 0']
    #allocation6 [shape = 's32[2]{0}', space=sflag, size = 0x8, scoped, tag = 'scoped memory for tpu_custom_call.1']
    %20 = vsyncpa [#allocation6], 0
    %s21 = scalar_lea.sflag [#allocation6], 1
    %22 = vsyncpa %s21, 0
    loop: start=0, step=1, limit=4
    $region2: #{tpu_custom_call.1} parent=1 // loop_pre_header
      _
    $region3: #{tpu_custom_call.1} parent=1 // loop_header
      %s24 = sphi 0, %s28
      %p25 = scmp.ge.s32.totalorder %s24, 4
      %s31 = sphi 0, %s43
      %s32 = sphi 0, %s39
      %s33 = sphi 0, %s31
      %s34 = sphi 0, %s32
      %s35 = sphi 0, %s33
      %s36 = sphi 0, %s34
      %s46 = sphi 0, %s48
      %s49 = sphi 0, %s46
      %s50 = sphi 0, %s49
      %s66 = sphi 0, %s50
      %s72 = sphi 0, %s74
      %s75 = sphi 0, %s72
      %s76 = sphi 0, %s75
      %s92 = sphi 0, %s76
      %s96 = sphi 0, %s96
      %s98 = sphi 0, %s96
      %s99 = sphi 0, %s98
      %s113 = sphi 0, %s99
      %s117 = sphi 0, %s117
      %s119 = sphi 0, %s117
      %s120 = sphi 0, %s119
      %s134 = sphi 0, %s120
      %s138 = sphi 0, %s138
      %s140 = sphi 0, %s138
      %s141 = sphi 0, %s140
      %s155 = sphi 0, %s141
      %s159 = sphi 0, %s159
      %s161 = sphi 0, %s159
      %s162 = sphi 0, %s161
      %s176 = sphi 0, %s162
      %s180 = sphi 0, %s180
      %s182 = sphi 0, %s180
      %s183 = sphi 0, %s182
      %s197 = sphi 0, %s183
      %s201 = sphi 0, %s201
      %s203 = sphi 0, %s201
      %s204 = sphi 0, %s203
      %s218 = sphi 0, %s204
      %s222 = sphi 0, %s222
      %s224 = sphi 0, %s222
      %s225 = sphi 0, %s224
      %s239 = sphi 0, %s225
      %s243 = sphi 0, %s243
      %s245 = sphi 0, %s243
      %s246 = sphi 0, %s245
      %s260 = sphi 0, %s246
      %s264 = sphi 0, %s264
      %s266 = sphi 0, %s264
      %s267 = sphi 0, %s266
      %s281 = sphi 0, %s267
      %s285 = sphi 0, %s285
      %s287 = sphi 0, %s285
      %s288 = sphi 0, %s287
      %s302 = sphi 0, %s288
      %s306 = sphi 0, %s306
      %s308 = sphi 0, %s306
      %s309 = sphi 0, %s308
      %s323 = sphi 0, %s309
      %s327 = sphi 0, %s327
      %s329 = sphi 0, %s327
      %s330 = sphi 0, %s329
      %s344 = sphi 0, %s330
      %s348 = sphi 0, %s348
      %s350 = sphi 0, %s348
      %s351 = sphi 0, %s350
      %s365 = sphi 0, %s351
      %s373 = sphi 0, %s375
      %s376 = sphi 0, %s373
      %s377 = sphi 0, %s376
      %s393 = sphi 0, %s377
    $region4: #{tpu_custom_call.1} parent=1 // loop_header_branch
      %27 = sbr.rel (%p25) target = $region8
    $region5: #{tpu_custom_call.1} parent=1 // loop_body
      %s29 = ssub.s32 %s24, 1
      %s30 = ssub.s32 %s24, 2
      %s37 = sadd.s32 1, %s32
      %p38 = scmp.ge.s32.totalorder %s37, 1
      %s39 = scalar_select %p38, 0, %s37
      %s40 = sadd.s32 1, %s31
      %s41 = scalar_select %p38, %s40, %s31
      %p42 = scmp.ge.s32.totalorder %s41, 2
      %s43 = scalar_select %p42, 0, %s41
      %s44 = ssub.s32 %s31, %s43
      %p45 = scmp.eq.s32.totalorder %s44, 0
      %s47 = sadd.s32 %s46, 1
      %s48 = scalar_select %p45, %s46, %s47
      %p51 = pneg %p45
      %p52 = scmp.eq.s32.totalorder %s24, 1
      %p53 = por %p51, %p52
      %p54 = scmp.ne.s32.totalorder %s46, %s49
      %p55 = scmp.eq.s32.totalorder %s24, 0
      %p56 = por %p54, %p55
      %p57 = scmp.ne.s32.totalorder %s46, %s49
      %p58 = scmp.eq.s32.totalorder %s29, 1
      %p59 = por %p57, %p58
      %p60 = scmp.ne.s32.totalorder %s49, %s50
      %p61 = scmp.eq.s32.totalorder %s29, 0
      %p62 = por %p60, %p61
      %p63 = scmp.ne.s32.totalorder %s49, %s50
      %p64 = scmp.eq.s32.totalorder %s30, 1
      %p65 = por %p63, %p64
      %p67 = scmp.ne.s32.totalorder %s50, %s66
      %p68 = scmp.eq.s32.totalorder %s30, 0
      %p69 = por %p67, %p68
      %s70 = ssub.s32 %s32, %s39
      %p71 = scmp.eq.s32.totalorder %s70, 0
      %s73 = sadd.s32 %s72, 1
      %s74 = scalar_select %p71, %s72, %s73
      %p77 = pneg %p71
      %p78 = scmp.eq.s32.totalorder %s24, 1
      %p79 = por %p77, %p78
      %p80 = scmp.ne.s32.totalorder %s72, %s75
      %p81 = scmp.eq.s32.totalorder %s24, 0
      %p82 = por %p80, %p81
      %p83 = scmp.ne.s32.totalorder %s72, %s75
      %p84 = scmp.eq.s32.totalorder %s29, 1
      %p85 = por %p83, %p84
      %p86 = scmp.ne.s32.totalorder %s75, %s76
      %p87 = scmp.eq.s32.totalorder %s29, 0
      %p88 = por %p86, %p87
      %p89 = scmp.ne.s32.totalorder %s75, %s76
      %p90 = scmp.eq.s32.totalorder %s30, 1
      %p91 = por %p89, %p90
      %p93 = scmp.ne.s32.totalorder %s76, %s92
      %p94 = scmp.eq.s32.totalorder %s30, 0
      %p95 = por %p93, %p94
      %s97 = sadd.s32 %s96, 1
      %p100 = scmp.eq.s32.totalorder %s24, 1
      %p101 = scmp.ne.s32.totalorder %s96, %s98
      %p102 = scmp.eq.s32.totalorder %s24, 0
      %p103 = por %p101, %p102
      %p104 = scmp.ne.s32.totalorder %s96, %s98
      %p105 = scmp.eq.s32.totalorder %s29, 1
      %p106 = por %p104, %p105
      %p107 = scmp.ne.s32.totalorder %s98, %s99
      %p108 = scmp.eq.s32.totalorder %s29, 0
      %p109 = por %p107, %p108
      %p110 = scmp.ne.s32.totalorder %s98, %s99
      %p111 = scmp.eq.s32.totalorder %s30, 1
      %p112 = por %p110, %p111
      %p114 = scmp.ne.s32.totalorder %s99, %s113
      %p115 = scmp.eq.s32.totalorder %s30, 0
      %p116 = por %p114, %p115
      %s118 = sadd.s32 %s117, 1
      %p121 = scmp.eq.s32.totalorder %s24, 1
      %p122 = scmp.ne.s32.totalorder %s117, %s119
      %p123 = scmp.eq.s32.totalorder %s24, 0
      %p124 = por %p122, %p123
      %p125 = scmp.ne.s32.totalorder %s117, %s119
      %p126 = scmp.eq.s32.totalorder %s29, 1
      %p127 = por %p125, %p126
      %p128 = scmp.ne.s32.totalorder %s119, %s120
      %p129 = scmp.eq.s32.totalorder %s29, 0
      %p130 = por %p128, %p129
      %p131 = scmp.ne.s32.totalorder %s119, %s120
      %p132 = scmp.eq.s32.totalorder %s30, 1
      %p133 = por %p131, %p132
      %p135 = scmp.ne.s32.totalorder %s120, %s134
      %p136 = scmp.eq.s32.totalorder %s30, 0
      %p137 = por %p135, %p136
      %s139 = sadd.s32 %s138, 1
      %p142 = scmp.eq.s32.totalorder %s24, 1
      %p143 = scmp.ne.s32.totalorder %s138, %s140
      %p144 = scmp.eq.s32.totalorder %s24, 0
      %p145 = por %p143, %p144
      %p146 = scmp.ne.s32.totalorder %s138, %s140
      %p147 = scmp.eq.s32.totalorder %s29, 1
      %p148 = por %p146, %p147
      %p149 = scmp.ne.s32.totalorder %s140, %s141
      %p150 = scmp.eq.s32.totalorder %s29, 0
      %p151 = por %p149, %p150
      %p152 = scmp.ne.s32.totalorder %s140, %s141
      %p153 = scmp.eq.s32.totalorder %s30, 1
      %p154 = por %p152, %p153
      %p156 = scmp.ne.s32.totalorder %s141, %s155
      %p157 = scmp.eq.s32.totalorder %s30, 0
      %p158 = por %p156, %p157
      %s160 = sadd.s32 %s159, 1
      %p163 = scmp.eq.s32.totalorder %s24, 1
      %p164 = scmp.ne.s32.totalorder %s159, %s161
      %p165 = scmp.eq.s32.totalorder %s24, 0
      %p166 = por %p164, %p165
      %p167 = scmp.ne.s32.totalorder %s159, %s161
      %p168 = scmp.eq.s32.totalorder %s29, 1
      %p169 = por %p167, %p168
      %p170 = scmp.ne.s32.totalorder %s161, %s162
      %p171 = scmp.eq.s32.totalorder %s29, 0
      %p172 = por %p170, %p171
      %p173 = scmp.ne.s32.totalorder %s161, %s162
      %p174 = scmp.eq.s32.totalorder %s30, 1
      %p175 = por %p173, %p174
      %p177 = scmp.ne.s32.totalorder %s162, %s176
      %p178 = scmp.eq.s32.totalorder %s30, 0
      %p179 = por %p177, %p178
      %s181 = sadd.s32 %s180, 1
      %p184 = scmp.eq.s32.totalorder %s24, 1
      %p185 = scmp.ne.s32.totalorder %s180, %s182
      %p186 = scmp.eq.s32.totalorder %s24, 0
      %p187 = por %p185, %p186
      %p188 = scmp.ne.s32.totalorder %s180, %s182
      %p189 = scmp.eq.s32.totalorder %s29, 1
      %p190 = por %p188, %p189
      %p191 = scmp.ne.s32.totalorder %s182, %s183
      %p192 = scmp.eq.s32.totalorder %s29, 0
      %p193 = por %p191, %p192
      %p194 = scmp.ne.s32.totalorder %s182, %s183
      %p195 = scmp.eq.s32.totalorder %s30, 1
      %p196 = por %p194, %p195
      %p198 = scmp.ne.s32.totalorder %s183, %s197
      %p199 = scmp.eq.s32.totalorder %s30, 0
      %p200 = por %p198, %p199
      %s202 = sadd.s32 %s201, 1
      %p205 = scmp.eq.s32.totalorder %s24, 1
      %p206 = scmp.ne.s32.totalorder %s201, %s203
      %p207 = scmp.eq.s32.totalorder %s24, 0
      %p208 = por %p206, %p207
      %p209 = scmp.ne.s32.totalorder %s201, %s203
      %p210 = scmp.eq.s32.totalorder %s29, 1
      %p211 = por %p209, %p210
      %p212 = scmp.ne.s32.totalorder %s203, %s204
      %p213 = scmp.eq.s32.totalorder %s29, 0
      %p214 = por %p212, %p213
      %p215 = scmp.ne.s32.totalorder %s203, %s204
      %p216 = scmp.eq.s32.totalorder %s30, 1
      %p217 = por %p215, %p216
      %p219 = scmp.ne.s32.totalorder %s204, %s218
      %p220 = scmp.eq.s32.totalorder %s30, 0
      %p221 = por %p219, %p220
      %s223 = sadd.s32 %s222, 1
      %p226 = scmp.eq.s32.totalorder %s24, 1
      %p227 = scmp.ne.s32.totalorder %s222, %s224
      %p228 = scmp.eq.s32.totalorder %s24, 0
      %p229 = por %p227, %p228
      %p230 = scmp.ne.s32.totalorder %s222, %s224
      %p231 = scmp.eq.s32.totalorder %s29, 1
      %p232 = por %p230, %p231
      %p233 = scmp.ne.s32.totalorder %s224, %s225
      %p234 = scmp.eq.s32.totalorder %s29, 0
      %p235 = por %p233, %p234
      %p236 = scmp.ne.s32.totalorder %s224, %s225
      %p237 = scmp.eq.s32.totalorder %s30, 1
      %p238 = por %p236, %p237
      %p240 = scmp.ne.s32.totalorder %s225, %s239
      %p241 = scmp.eq.s32.totalorder %s30, 0
      %p242 = por %p240, %p241
      %s244 = sadd.s32 %s243, 1
      %p247 = scmp.eq.s32.totalorder %s24, 1
      %p248 = scmp.ne.s32.totalorder %s243, %s245
      %p249 = scmp.eq.s32.totalorder %s24, 0
      %p250 = por %p248, %p249
      %p251 = scmp.ne.s32.totalorder %s243, %s245
      %p252 = scmp.eq.s32.totalorder %s29, 1
      %p253 = por %p251, %p252
      %p254 = scmp.ne.s32.totalorder %s245, %s246
      %p255 = scmp.eq.s32.totalorder %s29, 0
      %p256 = por %p254, %p255
      %p257 = scmp.ne.s32.totalorder %s245, %s246
      %p258 = scmp.eq.s32.totalorder %s30, 1
      %p259 = por %p257, %p258
      %p261 = scmp.ne.s32.totalorder %s246, %s260
      %p262 = scmp.eq.s32.totalorder %s30, 0
      %p263 = por %p261, %p262
      %s265 = sadd.s32 %s264, 1
      %p268 = scmp.eq.s32.totalorder %s24, 1
      %p269 = scmp.ne.s32.totalorder %s264, %s266
      %p270 = scmp.eq.s32.totalorder %s24, 0
      %p271 = por %p269, %p270
      %p272 = scmp.ne.s32.totalorder %s264, %s266
      %p273 = scmp.eq.s32.totalorder %s29, 1
      %p274 = por %p272, %p273
      %p275 = scmp.ne.s32.totalorder %s266, %s267
      %p276 = scmp.eq.s32.totalorder %s29, 0
      %p277 = por %p275, %p276
      %p278 = scmp.ne.s32.totalorder %s266, %s267
      %p279 = scmp.eq.s32.totalorder %s30, 1
      %p280 = por %p278, %p279
      %p282 = scmp.ne.s32.totalorder %s267, %s281
      %p283 = scmp.eq.s32.totalorder %s30, 0
      %p284 = por %p282, %p283
      %s286 = sadd.s32 %s285, 1
      %p289 = scmp.eq.s32.totalorder %s24, 1
      %p290 = scmp.ne.s32.totalorder %s285, %s287
      %p291 = scmp.eq.s32.totalorder %s24, 0
      %p292 = por %p290, %p291
      %p293 = scmp.ne.s32.totalorder %s285, %s287
      %p294 = scmp.eq.s32.totalorder %s29, 1
      %p295 = por %p293, %p294
      %p296 = scmp.ne.s32.totalorder %s287, %s288
      %p297 = scmp.eq.s32.totalorder %s29, 0
      %p298 = por %p296, %p297
      %p299 = scmp.ne.s32.totalorder %s287, %s288
      %p300 = scmp.eq.s32.totalorder %s30, 1
      %p301 = por %p299, %p300
      %p303 = scmp.ne.s32.totalorder %s288, %s302
      %p304 = scmp.eq.s32.totalorder %s30, 0
      %p305 = por %p303, %p304
      %s307 = sadd.s32 %s306, 1
      %p310 = scmp.eq.s32.totalorder %s24, 1
      %p311 = scmp.ne.s32.totalorder %s306, %s308
      %p312 = scmp.eq.s32.totalorder %s24, 0
      %p313 = por %p311, %p312
      %p314 = scmp.ne.s32.totalorder %s306, %s308
      %p315 = scmp.eq.s32.totalorder %s29, 1
      %p316 = por %p314, %p315
      %p317 = scmp.ne.s32.totalorder %s308, %s309
      %p318 = scmp.eq.s32.totalorder %s29, 0
      %p319 = por %p317, %p318
      %p320 = scmp.ne.s32.totalorder %s308, %s309
      %p321 = scmp.eq.s32.totalorder %s30, 1
      %p322 = por %p320, %p321
      %p324 = scmp.ne.s32.totalorder %s309, %s323
      %p325 = scmp.eq.s32.totalorder %s30, 0
      %p326 = por %p324, %p325
      %s328 = sadd.s32 %s327, 1
      %p331 = scmp.eq.s32.totalorder %s24, 1
      %p332 = scmp.ne.s32.totalorder %s327, %s329
      %p333 = scmp.eq.s32.totalorder %s24, 0
      %p334 = por %p332, %p333
      %p335 = scmp.ne.s32.totalorder %s327, %s329
      %p336 = scmp.eq.s32.totalorder %s29, 1
      %p337 = por %p335, %p336
      %p338 = scmp.ne.s32.totalorder %s329, %s330
      %p339 = scmp.eq.s32.totalorder %s29, 0
      %p340 = por %p338, %p339
      %p341 = scmp.ne.s32.totalorder %s329, %s330
      %p342 = scmp.eq.s32.totalorder %s30, 1
      %p343 = por %p341, %p342
      %p345 = scmp.ne.s32.totalorder %s330, %s344
      %p346 = scmp.eq.s32.totalorder %s30, 0
      %p347 = por %p345, %p346
      %s349 = sadd.s32 %s348, 1
      %p352 = scmp.eq.s32.totalorder %s24, 1
      %p353 = scmp.ne.s32.totalorder %s348, %s350
      %p354 = scmp.eq.s32.totalorder %s24, 0
      %p355 = por %p353, %p354
      %p356 = scmp.ne.s32.totalorder %s348, %s350
      %p357 = scmp.eq.s32.totalorder %s29, 1
      %p358 = por %p356, %p357
      %p359 = scmp.ne.s32.totalorder %s350, %s351
      %p360 = scmp.eq.s32.totalorder %s29, 0
      %p361 = por %p359, %p360
      %p362 = scmp.ne.s32.totalorder %s350, %s351
      %p363 = scmp.eq.s32.totalorder %s30, 1
      %p364 = por %p362, %p363
      %p366 = scmp.ne.s32.totalorder %s351, %s365
      %p367 = scmp.eq.s32.totalorder %s30, 0
      %p368 = por %p366, %p367
      %s369 = ssub.s32 %s31, %s43
      %s370 = ssub.s32 %s32, %s39
      %s371 = sor.u32 %s369, %s370
      %p372 = scmp.eq.s32.totalorder %s371, 0
      %s374 = sadd.s32 %s373, 1
      %s375 = scalar_select %p372, %s373, %s374
      %p378 = pneg %p372
      %p379 = scmp.eq.s32.totalorder %s24, 1
      %p380 = por %p378, %p379
      %p381 = scmp.ne.s32.totalorder %s373, %s376
      %p382 = scmp.eq.s32.totalorder %s24, 0
      %p383 = por %p381, %p382
      %p384 = scmp.ne.s32.totalorder %s373, %s376
      %p385 = scmp.eq.s32.totalorder %s29, 1
      %p386 = por %p384, %p385
      %p387 = scmp.ne.s32.totalorder %s376, %s377
      %p388 = scmp.eq.s32.totalorder %s29, 0
      %p389 = por %p387, %p388
      %p390 = scmp.ne.s32.totalorder %s376, %s377
      %p391 = scmp.eq.s32.totalorder %s30, 1
      %p392 = por %p390, %p391
      %p394 = scmp.ne.s32.totalorder %s377, %s393
      %p395 = scmp.eq.s32.totalorder %s30, 0
      %p396 = por %p394, %p395
      %p397 = scmp.le.s32.totalorder 1, %s24
      %p398 = scmp.lt.s32.totalorder %s24, 3
      %p399 = pnand %p397, %p398
      %p400 = pneg %p399
      // Predicated region
      $region9: #{tpu_custom_call.1} parent=5 // pred_check
        _
      $region10: #{tpu_custom_call.1} parent=5 // pred_check_branch
        %402 = sbr.rel (%p399) target = $region12
      $region11: #{tpu_custom_call.1} parent=5 // pred_region
        %s403 = ssub.s32 %s24, 1
        // Predicated region
        $region13: #{tpu_custom_call.1} parent=11 // pred_check
          %p404 = pneg %p88
        $region14: #{tpu_custom_call.1} parent=11 // pred_check_branch
          %406 = sbr.rel (%p404) target = $region16
        $region15: #{tpu_custom_call.1} parent=11 // pred_region
          %p407 = scmp.lt.s32.totalorder %s34, 0
          %s408 = scalar_select %p407, %s34, 0
          %s409 = smul.addr %s408, 8
          %s410 = scalar_lea.vmem %s1, %s409
        $region16: #{tpu_custom_call.1} parent=11 // pred_fallthru
          _
        // Predicated region
        $region17: #{tpu_custom_call.1} parent=11 // pred_check
          %p411 = pneg %p109
        $region18: #{tpu_custom_call.1} parent=11 // pred_check_branch
          %413 = sbr.rel (%p411) target = $region20
        $region19: #{tpu_custom_call.1} parent=11 // pred_region
          _
        $region20: #{tpu_custom_call.1} parent=11 // pred_fallthru
          _
        // Predicated region
        $region21: #{tpu_custom_call.1} parent=11 // pred_check
          %p414 = pneg %p130
        $region22: #{tpu_custom_call.1} parent=11 // pred_check_branch
          %416 = sbr.rel (%p414) target = $region24
        $region23: #{tpu_custom_call.1} parent=11 // pred_region
          _
        $region24: #{tpu_custom_call.1} parent=11 // pred_fallthru
          _
        // Predicated region
        $region25: #{tpu_custom_call.1} parent=11 // pred_check
          %p417 = pneg %p151
        $region26: #{tpu_custom_call.1} parent=11 // pred_check_branch
          %419 = sbr.rel (%p417) target = $region28
        $region27: #{tpu_custom_call.1} parent=11 // pred_region
          _
        $region28: #{tpu_custom_call.1} parent=11 // pred_fallthru
          _
        // Predicated region
        $region29: #{tpu_custom_call.1} parent=11 // pred_check
          %p420 = pneg %p172
        $region30: #{tpu_custom_call.1} parent=11 // pred_check_branch
          %422 = sbr.rel (%p420) target = $region32
        $region31: #{tpu_custom_call.1} parent=11 // pred_region
          _
        $region32: #{tpu_custom_call.1} parent=11 // pred_fallthru
          _
        // Predicated region
        $region33: #{tpu_custom_call.1} parent=11 // pred_check
          %p423 = pneg %p193
        $region34: #{tpu_custom_call.1} parent=11 // pred_check_branch
          %425 = sbr.rel (%p423) target = $region36
        $region35: #{tpu_custom_call.1} parent=11 // pred_region
          _
        $region36: #{tpu_custom_call.1} parent=11 // pred_fallthru
          _
        // Predicated region
        $region37: #{tpu_custom_call.1} parent=11 // pred_check
          %p426 = pneg %p214
        $region38: #{tpu_custom_call.1} parent=11 // pred_check_branch
          %428 = sbr.rel (%p426) target = $region40
        $region39: #{tpu_custom_call.1} parent=11 // pred_region
          _
        $region40: #{tpu_custom_call.1} parent=11 // pred_fallthru
          _
        // Predicated region
        $region41: #{tpu_custom_call.1} parent=11 // pred_check
          %p429 = pneg %p235
        $region42: #{tpu_custom_call.1} parent=11 // pred_check_branch
          %431 = sbr.rel (%p429) target = $region44
        $region43: #{tpu_custom_call.1} parent=11 // pred_region
          _
        $region44: #{tpu_custom_call.1} parent=11 // pred_fallthru
          _
        // Predicated region
        $region45: #{tpu_custom_call.1} parent=11 // pred_check
          %p432 = pneg %p256
        $region46: #{tpu_custom_call.1} parent=11 // pred_check_branch
          %434 = sbr.rel (%p432) target = $region48
        $region47: #{tpu_custom_call.1} parent=11 // pred_region
          _
        $region48: #{tpu_custom_call.1} parent=11 // pred_fallthru
          _
        // Predicated region
        $region49: #{tpu_custom_call.1} parent=11 // pred_check
          %p435 = pneg %p277
        $region50: #{tpu_custom_call.1} parent=11 // pred_check_branch
          %437 = sbr.rel (%p435) target = $region52
        $region51: #{tpu_custom_call.1} parent=11 // pred_region
          _
        $region52: #{tpu_custom_call.1} parent=11 // pred_fallthru
          _
        // Predicated region
        $region53: #{tpu_custom_call.1} parent=11 // pred_check
          %p438 = pneg %p298
        $region54: #{tpu_custom_call.1} parent=11 // pred_check_branch
          %440 = sbr.rel (%p438) target = $region56
        $region55: #{tpu_custom_call.1} parent=11 // pred_region
          _
        $region56: #{tpu_custom_call.1} parent=11 // pred_fallthru
          _
        // Predicated region
        $region57: #{tpu_custom_call.1} parent=11 // pred_check
          %p441 = pneg %p319
        $region58: #{tpu_custom_call.1} parent=11 // pred_check_branch
          %443 = sbr.rel (%p441) target = $region60
        $region59: #{tpu_custom_call.1} parent=11 // pred_region
          _
        $region60: #{tpu_custom_call.1} parent=11 // pred_fallthru
          _
        // Predicated region
        $region61: #{tpu_custom_call.1} parent=11 // pred_check
          %p444 = pneg %p340
        $region62: #{tpu_custom_call.1} parent=11 // pred_check_branch
          %446 = sbr.rel (%p444) target = $region64
        $region63: #{tpu_custom_call.1} parent=11 // pred_region
          _
        $region64: #{tpu_custom_call.1} parent=11 // pred_fallthru
          _
        // Predicated region
        $region65: #{tpu_custom_call.1} parent=11 // pred_check
          %p447 = pneg %p361
        $region66: #{tpu_custom_call.1} parent=11 // pred_check_branch
          %449 = sbr.rel (%p447) target = $region68
        $region67: #{tpu_custom_call.1} parent=11 // pred_region
          _
        $region68: #{tpu_custom_call.1} parent=11 // pred_fallthru
          _
      $region12: #{tpu_custom_call.1} parent=5 // pred_fallthru
        _
      %p450 = scmp.lt.s32.totalorder %s24, 2
      // Predicated region
      $region69: #{tpu_custom_call.1} parent=5 // pred_check
        %p451 = pneg %p450
      $region70: #{tpu_custom_call.1} parent=5 // pred_check_branch
        %453 = sbr.rel (%p451) target = $region72
      $region71: #{tpu_custom_call.1} parent=5 // pred_region
        // Predicated region
        $region73: #{tpu_custom_call.1} parent=71 // pred_check
          %p454 = pneg %p56
        $region74: #{tpu_custom_call.1} parent=71 // pred_check_branch
          %456 = sbr.rel (%p454) target = $region76
        $region75: #{tpu_custom_call.1} parent=71 // pred_region
          %p457 = scmp.lt.s32.totalorder %s31, 1
          %s458 = scalar_select %p457, %s31, 1
          %s459 = smul.addr %s458, 8
          %s460 = scalar_lea.vmem %s0, %s459
        $region76: #{tpu_custom_call.1} parent=71 // pred_fallthru
          _
      $region72: #{tpu_custom_call.1} parent=5 // pred_fallthru
        _
      %p461 = scmp.le.s32.totalorder 1, %s24
      %p462 = scmp.lt.s32.totalorder %s24, 3
      %p463 = pnand %p461, %p462
      %p464 = pneg %p463
      // Predicated region
      $region77: #{tpu_custom_call.1} parent=5 // pred_check
        _
      $region78: #{tpu_custom_call.1} parent=5 // pred_check_branch
        %466 = sbr.rel (%p463) target = $region80
      $region79: #{tpu_custom_call.1} parent=5 // pred_region
        %s467 = ssub.s32 %s24, 1
        %p468 = scmp.lt.s32.totalorder %s33, 1
        %s469 = scalar_select %p468, %s33, 1
        %s470 = smul.addr %s469, 8
        %s471 = scalar_lea.vmem %s0, %s470
        %p472 = pneg %p62
        %p473 = pneg %p59
        %p474 = scmp.lt.s32.totalorder %s34, 0
        %s475 = scalar_select %p474, %s34, 0
        %s476 = smul.addr %s475, 8
        %s477 = scalar_lea.vmem %s1, %s476
        %p478 = pneg %p88
        %p479 = pneg %p85
        %p480 = pneg %p109
        %p481 = pneg %p106
        %p482 = pneg %p130
        %p483 = pneg %p127
        %p484 = pneg %p151
        %p485 = pneg %p148
        %p486 = pneg %p172
        %p487 = pneg %p169
        %p488 = pneg %p193
        %p489 = pneg %p190
        %p490 = pneg %p214
        %p491 = pneg %p211
        %p492 = pneg %p235
        %p493 = pneg %p232
        %p494 = pneg %p256
        %p495 = pneg %p253
        %p496 = pneg %p277
        %p497 = pneg %p274
        %p498 = pneg %p298
        %p499 = pneg %p295
        %p500 = pneg %p319
        %p501 = pneg %p316
        %p502 = pneg %p340
        %p503 = pneg %p337
        %p504 = pneg %p361
        %p505 = pneg %p358
        %p506 = pneg %p389
        %p507 = pneg %p386
        %s508 = sand.u32 %s376, 1
        %s509 = scalar_lea.sflag [#allocation6], %s508
        %s510 = sand.u32 %s376, 1
        %s511 = smul.addr %s510, 8
        %s512 = scalar_lea.vmem [#allocation5], %s511
        %p513 = scmp.lt.s32.totalorder %s33, 1
        %s514 = scalar_select %p513, %s33, 1
        %s515 = smul.addr %s514, 8
        %s516 = scalar_lea.vmem %s0, %s515
        %p517 = scmp.lt.s32.totalorder %s34, 0
        %s518 = scalar_select %p517, %s34, 0
        %s519 = smul.addr %s518, 8
        %s520 = scalar_lea.vmem %s1, %s519
        %p522 = scmp.eq.s32.totalorder %s34, 0
        // Predicated region
        $region81: #{tpu_custom_call.1} parent=79 // pred_check
          %p523 = pneg %p522
        $region82: #{tpu_custom_call.1} parent=79 // pred_check_branch
          %525 = sbr.rel (%p523) target = $region84
        $region83: #{tpu_custom_call.1} parent=79 // pred_region
          %v526 = vld [vmem:[%s516] sm:$0xff]
          %v527 = vld [vmem:[%s2] sm:$0x1]
          %v528 = vld [vmem:[%s3] sm:$0x1]
          %vm529 = vcmask 261120
          %v530 = vsel %vm529, %v526, 0.0
          %531 = vadd.xlane.f32.xlu0 %v530
          %v532 = vpop.xlane.xlu0 %531
          %v533 = vrcp.pop 32.0
          %v534 = vmul.f32 32.0, %v533
          %v535 = vsub.f32 1.0, %v534
          %v536 = vmul.f32 %v533, %v535
          %v537 = vadd.f32 %v533, %v536
          %vm538 = vweird.f32 %v533
          %v539 = vsel %vm538, %v533, %v537
          %v540 = vmul.f32 %v532, %v539
          %v541 = vsub.f32 %v526, %v540
          %v542 = vmul.f32 %v541, %v541
          %v543 = vsel %vm529, %v542, 0.0
          %544 = vadd.xlane.f32.xlu0 %v543
          %v545 = vpop.xlane.xlu0 %544
          %v546 = vmul.f32 %v545, %v539
          %v547 = vadd.f32 %v546, 1e-05
          %v548 = vrsqrt.pop %v547
          %v549 = vmul.f32 %v548, %v547
          %v550 = vmul.f32 %v549, %v548
          %v551 = vmul.f32 0.5, %v550
          %v552 = vsub.f32 1.5, %v551
          %v553 = vmul.f32 %v548, %v552
          %vm554 = vweird.f32 %v547
          %vm555 = vweird.f32 %v548
          %vm556 = vmor %vm554, %vm555
          %v557 = vsel %vm556, %v548, %v553
          %v558 = vmul.f32 %v541, %v557
          %v560 = vperm.slane %v527, 0
          %v562 = vmul.f32 %v558, %v560
          %v564 = vperm.slane %v528, 0
          %v566 = vadd.f32 %v562, %v564
          %v567 = vpack.c.bf16 %v566, %v566
          %v568 = vld [vmem:[%s4] sm:$0xf]
          %v569 = vld [vmem:[%s4 + $0x4] sm:$0xf]
          %v570 = vld [vmem:[%s4 + $0x8] sm:$0xf]
          %v571 = vld [vmem:[%s4 + $0xc] sm:$0xf]
          %v576 = vunpack.c.l.b16 %v568
          %v577 = vunpack.c.l.b16 %v569
          %v578 = vunpack.c.l.b16 %v570
          %v579 = vunpack.c.l.b16 %v571
          %v580 = vpack.c.b16 %v577, %v576
          %v581 = vpack.c.b16 %v579, %v578
          %v585 = vsel %vm529, %v567, 0
          %587 = vmatpush.bf16.msra.mxu0 0
          %588 = vmatpush.bf16.msra.mxu0 0
          %589 = vmatpush.bf16.msra.mxu0 0
          %590 = vmatpush.bf16.msra.mxu0 0
          %591 = vmatpush.bf16.msra.mxu0 0
          %592 = vmatpush.bf16.msra.mxu0 0
          %593 = vmatpush.bf16.msra.mxu0 %v581
          %594 = vmatpush.bf16.msra.mxu0 %v580
          %595 = vmatmul.bf16.gmra.mxu0 %v585
          %v596 = vpop.f32.mrf.mxu0
          %v597 = vadd.f32 0.0, %v596
          %v598 = vpop.f32.mrf.mxu0
          %599 = vdwg.mxu0
          %v600 = vmul.f32 %v597, 0.35355338
          %602 = vrot.lane.b32.xlu0 %v600, 120
          %v603 = vpop.permute.xlu0 %602
          %605 = vrot.lane.b32.xlu0 %v600, 112
          %v606 = vpop.permute.xlu0 %605
          %608 = vrot.lane.b32.xlu0 %v600, 104
          %v609 = vpop.permute.xlu0 %608
          %v611 = vrot.slane %v606, 4
          %vm612 = vcmask 1047556
          %v613 = vsel %vm612, %v611, %v600
          %v614 = vrot.slane %v600, 4
          %v615 = vsel %vm612, %v606, %v614
          %v617 = vunpack.c.l.s4 1983009808
          %v618 = vunpack.c.0.s8 %v617
          %v619 = vperm.slane %v613, %v618
          %v621 = vunpack.c.l.s4 1983009808
          %v622 = vunpack.c.0.s8 %v621
          %v623 = vperm.slane %v615, %v622
          %v624 = vrot.slane %v609, 4
          %v625 = vsel %vm612, %v624, %v603
          %v626 = vrot.slane %v603, 4
          %v627 = vsel %vm612, %v609, %v626
          %v629 = vunpack.c.l.s4 1983009808
          %v630 = vunpack.c.0.s8 %v629
          %v631 = vperm.slane %v625, %v630
          %v633 = vunpack.c.l.s4 1983009808
          %v634 = vunpack.c.0.s8 %v633
          %v635 = vperm.slane %v627, %v634
          %v636 = vrot.slane %v631, 4
          %v637 = vsel %vm612, %v636, %v619
          %v638 = vrot.slane %v619, 4
          %v639 = vsel %vm612, %v631, %v638
          %v641 = vunpack.c.l.s4 1934713408
          %v642 = vunpack.c.0.s8 %v641
          %v643 = vperm.slane %v637, %v642
          %v645 = vunpack.c.l.s4 1934713408
          %v646 = vunpack.c.0.s8 %v645
          %v647 = vperm.slane %v639, %v646
          %v648 = vrot.slane %v635, 4
          %v649 = vsel %vm612, %v648, %v623
          %v650 = vrot.slane %v623, 4
          %v651 = vsel %vm612, %v635, %v650
          %v653 = vunpack.c.l.s4 1934713408
          %v654 = vunpack.c.0.s8 %v653
          %v655 = vperm.slane %v649, %v654
          %v657 = vunpack.c.l.s4 1934713408
          %v658 = vunpack.c.0.s8 %v657
          %v659 = vperm.slane %v651, %v658
          %v660 = vrot.slane %v643, 4
          %v661 = vsel %vm612, 0.0, %v660
          %v662 = vrot.slane %v647, 4
          %v663 = vsel %vm612, 0.0, %v662
          %v664 = vrot.slane %v655, 4
          %v665 = vsel %vm612, 0.0, %v664
          %v666 = vrot.slane %v659, 4
          %v667 = vsel %vm612, 0.0, %v666
          %v668 = vsel %vm612, %v662, %v643
          %v670 = vunpack.c.l.s4 1983009808
          %v671 = vunpack.c.0.s8 %v670
          %v672 = vperm.slane %v668, %v671
          %v673 = vrot.slane %v663, 4
          %v674 = vsel %vm612, %v673, %v661
          %v676 = vunpack.c.l.s4 1983009808
          %v677 = vunpack.c.0.s8 %v676
          %v678 = vperm.slane %v674, %v677
          %v679 = vsel %vm612, %v666, %v655
          %v681 = vunpack.c.l.s4 1983009808
          %v682 = vunpack.c.0.s8 %v681
          %v683 = vperm.slane %v679, %v682
          %v684 = vrot.slane %v667, 4
          %v685 = vsel %vm612, %v684, %v665
          %v687 = vunpack.c.l.s4 1983009808
          %v688 = vunpack.c.0.s8 %v687
          %v689 = vperm.slane %v685, %v688
          %v690 = vrot.slane %v678, 4
          %v691 = vsel %vm612, %v690, %v672
          %v692 = vrot.slane %v672, 4
          %v693 = vsel %vm612, %v678, %v692
          %v695 = vunpack.c.l.s4 1934713408
          %v696 = vunpack.c.0.s8 %v695
          %v697 = vperm.slane %v691, %v696
          %v699 = vunpack.c.l.s4 1934713408
          %v700 = vunpack.c.0.s8 %v699
          %v701 = vperm.slane %v693, %v700
          %v702 = vrot.slane %v689, 4
          %v703 = vsel %vm612, %v702, %v683
          %v704 = vrot.slane %v683, 4
          %v705 = vsel %vm612, %v689, %v704
          %v707 = vunpack.c.l.s4 1934713408
          %v708 = vunpack.c.0.s8 %v707
          %v709 = vperm.slane %v703, %v708
          %v711 = vunpack.c.l.s4 1934713408
          %v712 = vunpack.c.0.s8 %v711
          %v713 = vperm.slane %v705, %v712
          %v714 = vrot.slane %v709, 4
          %v715 = vsel %vm612, %v714, %v697
          %v716 = vrot.slane %v697, 4
          %v717 = vsel %vm612, %v709, %v716
          %v718 = vrot.slane %v713, 4
          %v719 = vsel %vm612, %v718, %v701
          %v720 = vrot.slane %v701, 4
          %v721 = vsel %vm612, %v713, %v720
          %v722 = vpack.c.bf16 %v715, %v715
          %v723 = vpack.c.bf16 %v717, %v717
          %v724 = vpack.c.bf16 %v719, %v719
          %v725 = vpack.c.bf16 %v721, %v721
          %vm726 = vcmask 60416
          %727 = vst.msk [vmem:[#allocation2] sm:$0xf] %vm726, %v722
          %728 = vst.msk [vmem:[#allocation2 + $0x4] sm:$0xf] %vm726, %v723
          %729 = vst.msk [vmem:[#allocation2 + $0x8] sm:$0xf] %vm726, %v724
          %730 = vst.msk [vmem:[#allocation2 + $0xc] sm:$0xf] %vm726, %v725
          %732 = vrot.lane.b32.xlu0 %v597, 120
          %v733 = vpop.permute.xlu0 %732
          %734 = vrot.lane.b32.xlu0 %v597, 112
          %v735 = vpop.permute.xlu0 %734
          %736 = vrot.lane.b32.xlu0 %v597, 104
          %v737 = vpop.permute.xlu0 %736
          %738 = vrot.lane.b32.xlu0 %v597, 96
          %v739 = vpop.permute.xlu0 %738
          %740 = vrot.lane.b32.xlu0 %v733, 96
          %v741 = vpop.permute.xlu0 %740
          %742 = vrot.lane.b32.xlu0 %v735, 96
          %v743 = vpop.permute.xlu0 %742
          %744 = vrot.lane.b32.xlu0 %v737, 96
          %v745 = vpop.permute.xlu0 %744
          %v750 = vrot.slane %v743, 4
          %v751 = vsel %vm612, %v750, %v739
          %v752 = vrot.slane %v739, 4
          %v753 = vsel %vm612, %v743, %v752
          %v755 = vunpack.c.l.s4 1983009808
          %v756 = vunpack.c.0.s8 %v755
          %v757 = vperm.slane %v751, %v756
          %v759 = vunpack.c.l.s4 1983009808
          %v760 = vunpack.c.0.s8 %v759
          %v761 = vperm.slane %v753, %v760
          %v762 = vrot.slane %v745, 4
          %v763 = vsel %vm612, %v762, %v741
          %v764 = vrot.slane %v741, 4
          %v765 = vsel %vm612, %v745, %v764
          %v767 = vunpack.c.l.s4 1983009808
          %v768 = vunpack.c.0.s8 %v767
          %v769 = vperm.slane %v763, %v768
          %v771 = vunpack.c.l.s4 1983009808
          %v772 = vunpack.c.0.s8 %v771
          %v773 = vperm.slane %v765, %v772
          %v774 = vrot.slane %v769, 4
          %v775 = vsel %vm612, %v774, %v757
          %v776 = vrot.slane %v757, 4
          %v777 = vsel %vm612, %v769, %v776
          %v779 = vunpack.c.l.s4 1934713408
          %v780 = vunpack.c.0.s8 %v779
          %v781 = vperm.slane %v775, %v780
          %v783 = vunpack.c.l.s4 1934713408
          %v784 = vunpack.c.0.s8 %v783
          %v785 = vperm.slane %v777, %v784
          %v786 = vrot.slane %v773, 4
          %v787 = vsel %vm612, %v786, %v761
          %v788 = vrot.slane %v761, 4
          %v789 = vsel %vm612, %v773, %v788
          %v791 = vunpack.c.l.s4 1934713408
          %v792 = vunpack.c.0.s8 %v791
          %v793 = vperm.slane %v787, %v792
          %v795 = vunpack.c.l.s4 1934713408
          %v796 = vunpack.c.0.s8 %v795
          %v797 = vperm.slane %v789, %v796
          %v798 = vrot.slane %v781, 4
          %v799 = vsel %vm612, 0.0, %v798
          %v800 = vrot.slane %v785, 4
          %v801 = vsel %vm612, 0.0, %v800
          %v802 = vrot.slane %v793, 4
          %v803 = vsel %vm612, 0.0, %v802
          %v804 = vrot.slane %v797, 4
          %v805 = vsel %vm612, 0.0, %v804
          %v806 = vsel %vm612, %v800, %v781
          %v808 = vunpack.c.l.s4 1983009808
          %v809 = vunpack.c.0.s8 %v808
          %v810 = vperm.slane %v806, %v809
          %v811 = vrot.slane %v801, 4
          %v812 = vsel %vm612, %v811, %v799
          %v814 = vunpack.c.l.s4 1983009808
          %v815 = vunpack.c.0.s8 %v814
          %v816 = vperm.slane %v812, %v815
          %v817 = vsel %vm612, %v804, %v793
          %v819 = vunpack.c.l.s4 1983009808
          %v820 = vunpack.c.0.s8 %v819
          %v821 = vperm.slane %v817, %v820
          %v822 = vrot.slane %v805, 4
          %v823 = vsel %vm612, %v822, %v803
          %v825 = vunpack.c.l.s4 1983009808
          %v826 = vunpack.c.0.s8 %v825
          %v827 = vperm.slane %v823, %v826
          %v828 = vrot.slane %v816, 4
          %v829 = vsel %vm612, %v828, %v810
          %v830 = vrot.slane %v810, 4
          %v831 = vsel %vm612, %v816, %v830
          %v833 = vunpack.c.l.s4 1934713408
          %v834 = vunpack.c.0.s8 %v833
          %v835 = vperm.slane %v829, %v834
          %v837 = vunpack.c.l.s4 1934713408
          %v838 = vunpack.c.0.s8 %v837
          %v839 = vperm.slane %v831, %v838
          %v840 = vrot.slane %v827, 4
          %v841 = vsel %vm612, %v840, %v821
          %v842 = vrot.slane %v821, 4
          %v843 = vsel %vm612, %v827, %v842
          %v845 = vunpack.c.l.s4 1934713408
          %v846 = vunpack.c.0.s8 %v845
          %v847 = vperm.slane %v841, %v846
          %v849 = vunpack.c.l.s4 1934713408
          %v850 = vunpack.c.0.s8 %v849
          %v851 = vperm.slane %v843, %v850
          %v852 = vrot.slane %v847, 4
          %v853 = vsel %vm612, %v852, %v835
          %v854 = vrot.slane %v835, 4
          %v855 = vsel %vm612, %v847, %v854
          %v856 = vrot.slane %v851, 4
          %v857 = vsel %vm612, %v856, %v839
          %v858 = vrot.slane %v839, 4
          %v859 = vsel %vm612, %v851, %v858
          %v860 = vpack.c.bf16 %v853, %v853
          %v861 = vpack.c.bf16 %v855, %v855
          %v862 = vpack.c.bf16 %v857, %v857
          %v863 = vpack.c.bf16 %v859, %v859
          %864 = vst.msk [vmem:[#allocation3] sm:$0xf] %vm726, %v860
          %865 = vst.msk [vmem:[#allocation3 + $0x4] sm:$0xf] %vm726, %v861
          %866 = vst.msk [vmem:[#allocation3 + $0x8] sm:$0xf] %vm726, %v862
          %867 = vst.msk [vmem:[#allocation3 + $0xc] sm:$0xf] %vm726, %v863
          %868 = vrot.lane.b32.xlu0 %v597, 64
          %v869 = vpop.permute.xlu0 %868
          %870 = vrot.lane.b32.xlu0 %v733, 64
          %v871 = vpop.permute.xlu0 %870
          %872 = vrot.lane.b32.xlu0 %v735, 64
          %v873 = vpop.permute.xlu0 %872
          %874 = vrot.lane.b32.xlu0 %v737, 64
          %v875 = vpop.permute.xlu0 %874
          %v880 = vrot.slane %v873, 4
          %v881 = vsel %vm612, %v880, %v869
          %v882 = vrot.slane %v869, 4
          %v883 = vsel %vm612, %v873, %v882
          %v885 = vunpack.c.l.s4 1983009808
          %v886 = vunpack.c.0.s8 %v885
          %v887 = vperm.slane %v881, %v886
          %v889 = vunpack.c.l.s4 1983009808
          %v890 = vunpack.c.0.s8 %v889
          %v891 = vperm.slane %v883, %v890
          %v892 = vrot.slane %v875, 4
          %v893 = vsel %vm612, %v892, %v871
          %v894 = vrot.slane %v871, 4
          %v895 = vsel %vm612, %v875, %v894
          %v897 = vunpack.c.l.s4 1983009808
          %v898 = vunpack.c.0.s8 %v897
          %v899 = vperm.slane %v893, %v898
          %v901 = vunpack.c.l.s4 1983009808
          %v902 = vunpack.c.0.s8 %v901
          %v903 = vperm.slane %v895, %v902
          %v904 = vrot.slane %v899, 4
          %v905 = vsel %vm612, %v904, %v887
          %v906 = vrot.slane %v887, 4
          %v907 = vsel %vm612, %v899, %v906
          %v909 = vunpack.c.l.s4 1934713408
          %v910 = vunpack.c.0.s8 %v909
          %v911 = vperm.slane %v905, %v910
          %v913 = vunpack.c.l.s4 1934713408
          %v914 = vunpack.c.0.s8 %v913
          %v915 = vperm.slane %v907, %v914
          %v916 = vrot.slane %v903, 4
          %v917 = vsel %vm612, %v916, %v891
          %v918 = vrot.slane %v891, 4
          %v919 = vsel %vm612, %v903, %v918
          %v921 = vunpack.c.l.s4 1934713408
          %v922 = vunpack.c.0.s8 %v921
          %v923 = vperm.slane %v917, %v922
          %v925 = vunpack.c.l.s4 1934713408
          %v926 = vunpack.c.0.s8 %v925
          %v927 = vperm.slane %v919, %v926
          %v928 = vrot.slane %v911, 4
          %v929 = vsel %vm612, 0.0, %v928
          %v930 = vrot.slane %v915, 4
          %v931 = vsel %vm612, 0.0, %v930
          %v932 = vrot.slane %v923, 4
          %v933 = vsel %vm612, 0.0, %v932
          %v934 = vrot.slane %v927, 4
          %v935 = vsel %vm612, 0.0, %v934
          %v936 = vsel %vm612, %v930, %v911
          %v938 = vunpack.c.l.s4 1983009808
          %v939 = vunpack.c.0.s8 %v938
          %v940 = vperm.slane %v936, %v939
          %v941 = vrot.slane %v931, 4
          %v942 = vsel %vm612, %v941, %v929
          %v944 = vunpack.c.l.s4 1983009808
          %v945 = vunpack.c.0.s8 %v944
          %v946 = vperm.slane %v942, %v945
          %v947 = vsel %vm612, %v934, %v923
          %v949 = vunpack.c.l.s4 1983009808
          %v950 = vunpack.c.0.s8 %v949
          %v951 = vperm.slane %v947, %v950
          %v952 = vrot.slane %v935, 4
          %v953 = vsel %vm612, %v952, %v933
          %v955 = vunpack.c.l.s4 1983009808
          %v956 = vunpack.c.0.s8 %v955
          %v957 = vperm.slane %v953, %v956
          %v958 = vrot.slane %v946, 4
          %v959 = vsel %vm612, %v958, %v940
          %v960 = vrot.slane %v940, 4
          %v961 = vsel %vm612, %v946, %v960
          %v963 = vunpack.c.l.s4 1934713408
          %v964 = vunpack.c.0.s8 %v963
          %v965 = vperm.slane %v959, %v964
          %v967 = vunpack.c.l.s4 1934713408
          %v968 = vunpack.c.0.s8 %v967
          %v969 = vperm.slane %v961, %v968
          %v970 = vrot.slane %v957, 4
          %v971 = vsel %vm612, %v970, %v951
          %v972 = vrot.slane %v951, 4
          %v973 = vsel %vm612, %v957, %v972
          %v975 = vunpack.c.l.s4 1934713408
          %v976 = vunpack.c.0.s8 %v975
          %v977 = vperm.slane %v971, %v976
          %v979 = vunpack.c.l.s4 1934713408
          %v980 = vunpack.c.0.s8 %v979
          %v981 = vperm.slane %v973, %v980
          %v982 = vrot.slane %v977, 4
          %v983 = vsel %vm612, %v982, %v965
          %v984 = vrot.slane %v965, 4
          %v985 = vsel %vm612, %v977, %v984
          %v986 = vrot.slane %v981, 4
          %v987 = vsel %vm612, %v986, %v969
          %v988 = vrot.slane %v969, 4
          %v989 = vsel %vm612, %v981, %v988
          %v990 = vpack.c.bf16 %v983, %v983
          %v991 = vpack.c.bf16 %v985, %v985
          %v992 = vpack.c.bf16 %v987, %v987
          %v993 = vpack.c.bf16 %v989, %v989
          %994 = vst.msk [vmem:[#allocation4] sm:$0xf] %vm726, %v990
          %995 = vst.msk [vmem:[#allocation4 + $0x4] sm:$0xf] %vm726, %v991
          %996 = vst.msk [vmem:[#allocation4 + $0x8] sm:$0xf] %vm726, %v992
          %997 = vst.msk [vmem:[#allocation4 + $0xc] sm:$0xf] %vm726, %v993
        $region84: #{tpu_custom_call.1} parent=79 // pred_fallthru
          _
        %s998 = smul.u32 %s34, 8
        %s999 = scalar_lea.vmem %s516, %s998
        %v1000 = vld [vmem:[%s999] sm:$0xff]
        %s1001 = sshra.s32 %s998, 3
        %s1002 = sand.u32 %s998, 7
        %s1003 = smul.addr %s1001, 4
        %s1004 = scalar_lea.vmem [#allocation2], %s1003
        %v1005 = vld [vmem:[%s1004] sm:$0xf]
        %v1006 = vld [vmem:[%s1004 + $0x4] sm:$0xf]
        %v1007 = vld [vmem:[%s1004 + $0x8] sm:$0xf]
        %v1008 = vld [vmem:[%s1004 + $0xc] sm:$0xf]
        %v1009 = vld [vmem:[#allocation3] sm:$0xf]
        %v1010 = vld [vmem:[#allocation3 + $0x4] sm:$0xf]
        %v1011 = vld [vmem:[#allocation3 + $0x8] sm:$0xf]
        %v1012 = vld [vmem:[#allocation3 + $0xc] sm:$0xf]
        %v1013 = vld [vmem:[%s520] sm:$0xff]
        %vm1014 = vcmask 64512
        %v1016 = vsel %vm1014, %v1005, 0
        %v1019 = vsel %vm1014, %v1009, 0
        %1021 = vmatpush.bf16.xpose.msra.mxu0 0
        %1022 = vmatpush.bf16.xpose.msra.mxu0 0
        %1023 = vmatpush.bf16.xpose.msra.mxu0 0
        %1024 = vmatpush.bf16.xpose.msra.mxu0 0
        %1025 = vmatpush.bf16.xpose.msra.mxu0 0
        %1026 = vmatpush.bf16.xpose.msra.mxu0 0
        %1027 = vmatpush.bf16.xpose.msra.mxu0 0
        %1028 = vmatpush.bf16.xpose.msra.mxu0 %v1019
        %1029 = vmatmul.bf16.gmra.mxu0 %v1016
        %v1030 = vpop.f32.mrf.mxu0
        %v1031 = vadd.f32 %v1013, %v1030
        %v1032 = vpop.f32.mrf.mxu0
        %1033 = vdwg.mxu0
        %v1035 = vsel %vm1014, %v1006, 0
        %v1038 = vsel %vm1014, %v1010, 0
        %1040 = vmatpush.bf16.xpose.msra.mxu0 0
        %1041 = vmatpush.bf16.xpose.msra.mxu0 0
        %1042 = vmatpush.bf16.xpose.msra.mxu0 0
        %1043 = vmatpush.bf16.xpose.msra.mxu0 0
        %1044 = vmatpush.bf16.xpose.msra.mxu0 0
        %1045 = vmatpush.bf16.xpose.msra.mxu0 0
        %1046 = vmatpush.bf16.xpose.msra.mxu0 0
        %1047 = vmatpush.bf16.xpose.msra.mxu0 %v1038
        %1048 = vmatmul.bf16.gmra.mxu0 %v1035
        %v1049 = vpop.f32.mrf.mxu0
        %v1050 = vadd.f32 %v1013, %v1049
        %v1051 = vpop.f32.mrf.mxu0
        %1052 = vdwg.mxu0
        %v1054 = vsel %vm1014, %v1007, 0
        %v1057 = vsel %vm1014, %v1011, 0
        %1059 = vmatpush.bf16.xpose.msra.mxu0 0
        %1060 = vmatpush.bf16.xpose.msra.mxu0 0
        %1061 = vmatpush.bf16.xpose.msra.mxu0 0
        %1062 = vmatpush.bf16.xpose.msra.mxu0 0
        %1063 = vmatpush.bf16.xpose.msra.mxu0 0
        %1064 = vmatpush.bf16.xpose.msra.mxu0 0
        %1065 = vmatpush.bf16.xpose.msra.mxu0 0
        %1066 = vmatpush.bf16.xpose.msra.mxu0 %v1057
        %1067 = vmatmul.bf16.gmra.mxu0 %v1054
        %v1068 = vpop.f32.mrf.mxu0
        %v1069 = vadd.f32 %v1013, %v1068
        %v1070 = vpop.f32.mrf.mxu0
        %1071 = vdwg.mxu0
        %v1073 = vsel %vm1014, %v1008, 0
        %v1076 = vsel %vm1014, %v1012, 0
        %1078 = vmatpush.bf16.xpose.msra.mxu0 0
        %1079 = vmatpush.bf16.xpose.msra.mxu0 0
        %1080 = vmatpush.bf16.xpose.msra.mxu0 0
        %1081 = vmatpush.bf16.xpose.msra.mxu0 0
        %1082 = vmatpush.bf16.xpose.msra.mxu0 0
        %1083 = vmatpush.bf16.xpose.msra.mxu0 0
        %1084 = vmatpush.bf16.xpose.msra.mxu0 0
        %1085 = vmatpush.bf16.xpose.msra.mxu0 %v1076
        %1086 = vmatmul.bf16.gmra.mxu0 %v1073
        %v1087 = vpop.f32.mrf.mxu0
        %v1088 = vadd.f32 %v1013, %v1087
        %v1089 = vpop.f32.mrf.mxu0
        %1090 = vdwg.mxu0
        %v1091 = vsel %vm1014, %v1031, -inf
        %1092 = vmax.xlane.f32.xlu0 %v1091
        %v1093 = vpop.xlane.xlu0 %1092
        %v1094 = vsel %vm1014, %v1050, -inf
        %1095 = vmax.xlane.f32.xlu0 %v1094
        %v1096 = vpop.xlane.xlu0 %1095
        %v1097 = vsel %vm1014, %v1069, -inf
        %1098 = vmax.xlane.f32.xlu0 %v1097
        %v1099 = vpop.xlane.xlu0 %1098
        %v1100 = vsel %vm1014, %v1088, -inf
        %1101 = vmax.xlane.f32.xlu0 %v1100
        %v1102 = vpop.xlane.xlu0 %1101
        %v1103 = vsub.f32 %v1031, %v1093
        %v1104 = vsub.f32 %v1050, %v1096
        %v1105 = vsub.f32 %v1069, %v1099
        %v1106 = vsub.f32 %v1088, %v1102
        %v1107 = vmul.f32 %v1103, 1.442695
        %v1108 = vpow.pop %v1107
        %v1109 = vmul.f32 %v1104, 1.442695
        %v1110 = vpow.pop %v1109
        %v1111 = vmul.f32 %v1105, 1.442695
        %v1112 = vpow.pop %v1111
        %v1113 = vmul.f32 %v1106, 1.442695
        %v1114 = vpow.pop %v1113
        %v1115 = vsel %vm1014, %v1108, 0.0
        %1116 = vadd.xlane.f32.xlu0 %v1115
        %v1117 = vpop.xlane.xlu0 %1116
        %v1118 = vsel %vm1014, %v1110, 0.0
        %1119 = vadd.xlane.f32.xlu0 %v1118
        %v1120 = vpop.xlane.xlu0 %1119
        %v1121 = vsel %vm1014, %v1112, 0.0
        %1122 = vadd.xlane.f32.xlu0 %v1121
        %v1123 = vpop.xlane.xlu0 %1122
        %v1124 = vsel %vm1014, %v1114, 0.0
        %1125 = vadd.xlane.f32.xlu0 %v1124
        %v1126 = vpop.xlane.xlu0 %1125
        %v1127 = vpack.c.bf16 %v1108, %v1108
        %v1128 = vpack.c.bf16 %v1110, %v1110
        %v1129 = vpack.c.bf16 %v1112, %v1112
        %v1130 = vpack.c.bf16 %v1114, %v1114
        %v1131 = vld [vmem:[#allocation4] sm:$0xf]
        %v1132 = vld [vmem:[#allocation4 + $0x4] sm:$0xf]
        %v1133 = vld [vmem:[#allocation4 + $0x8] sm:$0xf]
        %v1134 = vld [vmem:[#allocation4 + $0xc] sm:$0xf]
        %v1136 = vsel %vm1014, %v1127, 0
        %vm1138 = vcmask 1043456
        %v1140 = vsel %vm1138, %v1131, 0
        %1142 = vmatpush.bf16.msra.mxu0 0
        %1143 = vmatpush.bf16.msra.mxu0 0
        %1144 = vmatpush.bf16.msra.mxu0 0
        %1145 = vmatpush.bf16.msra.mxu0 0
        %1146 = vmatpush.bf16.msra.mxu0 0
        %1147 = vmatpush.bf16.msra.mxu0 0
        %1148 = vmatpush.bf16.msra.mxu0 0
        %1149 = vmatpush.bf16.msra.mxu0 %v1140
        %1150 = vmatmul.bf16.gmra.mxu0 %v1136
        %v1151 = vpop.f32.mrf.mxu0
        %v1152 = vadd.f32 0.0, %v1151
        %v1153 = vpop.f32.mrf.mxu0
        %1154 = vdwg.mxu0
        %v1156 = vsel %vm1014, %v1128, 0
        %v1159 = vsel %vm1138, %v1132, 0
        %1161 = vmatpush.bf16.msra.mxu0 0
        %1162 = vmatpush.bf16.msra.mxu0 0
        %1163 = vmatpush.bf16.msra.mxu0 0
        %1164 = vmatpush.bf16.msra.mxu0 0
        %1165 = vmatpush.bf16.msra.mxu0 0
        %1166 = vmatpush.bf16.msra.mxu0 0
        %1167 = vmatpush.bf16.msra.mxu0 0
        %1168 = vmatpush.bf16.msra.mxu0 %v1159
        %1169 = vmatmul.bf16.gmra.mxu0 %v1156
        %v1170 = vpop.f32.mrf.mxu0
        %v1171 = vadd.f32 0.0, %v1170
        %v1172 = vpop.f32.mrf.mxu0
        %1173 = vdwg.mxu0
        %v1175 = vsel %vm1014, %v1129, 0
        %v1178 = vsel %vm1138, %v1133, 0
        %1180 = vmatpush.bf16.msra.mxu0 0
        %1181 = vmatpush.bf16.msra.mxu0 0
        %1182 = vmatpush.bf16.msra.mxu0 0
        %1183 = vmatpush.bf16.msra.mxu0 0
        %1184 = vmatpush.bf16.msra.mxu0 0
        %1185 = vmatpush.bf16.msra.mxu0 0
        %1186 = vmatpush.bf16.msra.mxu0 0
        %1187 = vmatpush.bf16.msra.mxu0 %v1178
        %1188 = vmatmul.bf16.gmra.mxu0 %v1175
        %v1189 = vpop.f32.mrf.mxu0
        %v1190 = vadd.f32 0.0, %v1189
        %v1191 = vpop.f32.mrf.mxu0
        %1192 = vdwg.mxu0
        %v1194 = vsel %vm1014, %v1130, 0
        %v1197 = vsel %vm1138, %v1134, 0
        %1199 = vmatpush.bf16.msra.mxu0 0
        %1200 = vmatpush.bf16.msra.mxu0 0
        %1201 = vmatpush.bf16.msra.mxu0 0
        %1202 = vmatpush.bf16.msra.mxu0 0
        %1203 = vmatpush.bf16.msra.mxu0 0
        %1204 = vmatpush.bf16.msra.mxu0 0
        %1205 = vmatpush.bf16.msra.mxu0 0
        %1206 = vmatpush.bf16.msra.mxu0 %v1197
        %1207 = vmatmul.bf16.gmra.mxu0 %v1194
        %v1208 = vpop.f32.mrf.mxu0
        %v1209 = vadd.f32 0.0, %v1208
        %v1210 = vpop.f32.mrf.mxu0
        %1211 = vdwg.mxu0
        %v1212 = vrcp.pop %v1117
        %v1213 = vrcp.pop %v1120
        %v1214 = vrcp.pop %v1123
        %v1215 = vrcp.pop %v1126
        %v1216 = vmul.f32 %v1152, %v1212
        %v1217 = vmul.f32 %v1171, %v1213
        %v1218 = vmul.f32 %v1190, %v1214
        %v1219 = vmul.f32 %v1209, %v1215
        %v1220 = vrot.slane %v1218, 4
        %vm1221 = vcmask 1047556
        %v1222 = vsel %vm1221, %v1220, %v1216
        %v1223 = vrot.slane %v1216, 4
        %v1224 = vsel %vm1221, %v1218, %v1223
        %v1226 = vunpack.c.l.s4 1983009808
        %v1227 = vunpack.c.0.s8 %v1226
        %v1228 = vperm.slane %v1222, %v1227
        %v1230 = vunpack.c.l.s4 1983009808
        %v1231 = vunpack.c.0.s8 %v1230
        %v1232 = vperm.slane %v1224, %v1231
        %v1233 = vrot.slane %v1219, 4
        %v1234 = vsel %vm1221, %v1233, %v1217
        %v1235 = vrot.slane %v1217, 4
        %v1236 = vsel %vm1221, %v1219, %v1235
        %v1238 = vunpack.c.l.s4 1983009808
        %v1239 = vunpack.c.0.s8 %v1238
        %v1240 = vperm.slane %v1234, %v1239
        %v1242 = vunpack.c.l.s4 1983009808
        %v1243 = vunpack.c.0.s8 %v1242
        %v1244 = vperm.slane %v1236, %v1243
        %v1245 = vrot.slane %v1240, 4
        %v1246 = vsel %vm1221, %v1245, %v1228
        %v1247 = vrot.slane %v1228, 4
        %v1248 = vsel %vm1221, %v1240, %v1247
        %v1250 = vunpack.c.l.s4 1934713408
        %v1251 = vunpack.c.0.s8 %v1250
        %v1252 = vperm.slane %v1246, %v1251
        %v1254 = vunpack.c.l.s4 1934713408
        %v1255 = vunpack.c.0.s8 %v1254
        %v1256 = vperm.slane %v1248, %v1255
        %v1257 = vrot.slane %v1244, 4
        %v1258 = vsel %vm1221, %v1257, %v1232
        %v1259 = vrot.slane %v1232, 4
        %v1260 = vsel %vm1221, %v1244, %v1259
        %v1262 = vunpack.c.l.s4 1934713408
        %v1263 = vunpack.c.0.s8 %v1262
        %v1264 = vperm.slane %v1258, %v1263
        %v1266 = vunpack.c.l.s4 1934713408
        %v1267 = vunpack.c.0.s8 %v1266
        %v1268 = vperm.slane %v1260, %v1267
        %v1269 = vrot.slane %v1252, 4
        %v1270 = vsel %vm1221, 0.0, %v1269
        %v1271 = vrot.slane %v1256, 4
        %v1272 = vsel %vm1221, 0.0, %v1271
        %v1273 = vrot.slane %v1264, 4
        %v1274 = vsel %vm1221, 0.0, %v1273
        %v1275 = vrot.slane %v1268, 4
        %v1276 = vsel %vm1221, 0.0, %v1275
        %v1277 = vsel %vm1221, %v1271, %v1252
        %v1279 = vunpack.c.l.s4 1983009808
        %v1280 = vunpack.c.0.s8 %v1279
        %v1281 = vperm.slane %v1277, %v1280
        %v1282 = vrot.slane %v1272, 4
        %v1283 = vsel %vm1221, %v1282, %v1270
        %v1285 = vunpack.c.l.s4 1983009808
        %v1286 = vunpack.c.0.s8 %v1285
        %v1287 = vperm.slane %v1283, %v1286
        %v1288 = vsel %vm1221, %v1275, %v1264
        %v1290 = vunpack.c.l.s4 1983009808
        %v1291 = vunpack.c.0.s8 %v1290
        %v1292 = vperm.slane %v1288, %v1291
        %v1293 = vrot.slane %v1276, 4
        %v1294 = vsel %vm1221, %v1293, %v1274
        %v1296 = vunpack.c.l.s4 1983009808
        %v1297 = vunpack.c.0.s8 %v1296
        %v1298 = vperm.slane %v1294, %v1297
        %v1299 = vrot.slane %v1287, 4
        %v1300 = vsel %vm1221, %v1299, %v1281
        %v1301 = vrot.slane %v1281, 4
        %v1302 = vsel %vm1221, %v1287, %v1301
        %v1304 = vunpack.c.l.s4 1934713408
        %v1305 = vunpack.c.0.s8 %v1304
        %v1306 = vperm.slane %v1300, %v1305
        %v1308 = vunpack.c.l.s4 1934713408
        %v1309 = vunpack.c.0.s8 %v1308
        %v1310 = vperm.slane %v1302, %v1309
        %v1311 = vrot.slane %v1298, 4
        %v1312 = vsel %vm1221, %v1311, %v1292
        %v1313 = vrot.slane %v1292, 4
        %v1314 = vsel %vm1221, %v1298, %v1313
        %v1316 = vunpack.c.l.s4 1934713408
        %v1317 = vunpack.c.0.s8 %v1316
        %v1318 = vperm.slane %v1312, %v1317
        %v1320 = vunpack.c.l.s4 1934713408
        %v1321 = vunpack.c.0.s8 %v1320
        %v1322 = vperm.slane %v1314, %v1321
        %v1323 = vrot.slane %v1318, 4
        %v1324 = vsel %vm1221, %v1323, %v1306
        %v1325 = vrot.slane %v1306, 4
        %v1326 = vsel %vm1221, %v1318, %v1325
        %v1327 = vrot.slane %v1322, 4
        %v1328 = vsel %vm1221, %v1327, %v1310
        %v1329 = vrot.slane %v1310, 4
        %v1330 = vsel %vm1221, %v1322, %v1329
        %1332 = vrot.lane.b32.xlu0 %v1326, 8
        %v1333 = vpop.permute.xlu0 %1332
        %1336 = vrot.lane.b32.xlu0 %v1328, 16
        %v1337 = vpop.permute.xlu0 %1336
        %1340 = vrot.lane.b32.xlu0 %v1330, 24
        %v1341 = vpop.permute.xlu0 %1340
        %v1343 = vsel %vm1014, %v1324, %v1333
        %vm1344 = vcmask 130048
        %v1345 = vsel %vm1344, %v1343, %v1337
        %vm1346 = vcmask 195584
        %v1347 = vsel %vm1346, %v1345, %v1341
        %v1348 = vpack.c.bf16 %v1347, %v1347
        %v1349 = vld [vmem:[%s5] sm:$0xf]
        %v1350 = vld [vmem:[%s5 + $0x4] sm:$0xf]
        %v1351 = vld [vmem:[%s5 + $0x8] sm:$0xf]
        %v1352 = vld [vmem:[%s5 + $0xc] sm:$0xf]
        %v1353 = vld [vmem:[%s6] sm:$0x1]
        %v1355 = vperm.slane %v1353, 0
        %v1361 = vunpack.c.l.b16 %v1349
        %v1362 = vunpack.c.l.b16 %v1350
        %v1363 = vunpack.c.l.b16 %v1351
        %v1364 = vunpack.c.l.b16 %v1352
        %v1365 = vpack.c.b16 %v1362, %v1361
        %v1366 = vpack.c.b16 %v1364, %v1363
        %vm1369 = vcmask 261120
        %v1371 = vsel %vm1369, %v1348, 0
        %1373 = vmatpush.bf16.msra.mxu0 0
        %1374 = vmatpush.bf16.msra.mxu0 0
        %1375 = vmatpush.bf16.msra.mxu0 0
        %1376 = vmatpush.bf16.msra.mxu0 0
        %1377 = vmatpush.bf16.msra.mxu0 0
        %1378 = vmatpush.bf16.msra.mxu0 0
        %1379 = vmatpush.bf16.msra.mxu0 %v1366
        %1380 = vmatpush.bf16.msra.mxu0 %v1365
        %1381 = vmatmul.bf16.gmra.mxu0 %v1371
        %v1382 = vpop.f32.mrf.mxu0
        %v1383 = vadd.f32 %v1355, %v1382
        %v1384 = vpop.f32.mrf.mxu0
        %1385 = vdwg.mxu0
        %v1386 = vadd.f32 %v1383, %v1000
        %v1387 = vld [vmem:[%s7] sm:$0x1]
        %v1388 = vld [vmem:[%s8] sm:$0x1]
        %v1389 = vsel %vm1369, %v1386, 0.0
        %1390 = vadd.xlane.f32.xlu0 %v1389
        %v1391 = vpop.xlane.xlu0 %1390
        %v1392 = vrcp.pop 32.0
        %v1393 = vmul.f32 32.0, %v1392
        %v1394 = vsub.f32 1.0, %v1393
        %v1395 = vmul.f32 %v1392, %v1394
        %v1396 = vadd.f32 %v1392, %v1395
        %vm1397 = vweird.f32 %v1392
        %v1398 = vsel %vm1397, %v1392, %v1396
        %v1399 = vmul.f32 %v1391, %v1398
        %v1400 = vsub.f32 %v1386, %v1399
        %v1401 = vmul.f32 %v1400, %v1400
        %v1402 = vsel %vm1369, %v1401, 0.0
        %1403 = vadd.xlane.f32.xlu0 %v1402
        %v1404 = vpop.xlane.xlu0 %1403
        %v1405 = vmul.f32 %v1404, %v1398
        %v1406 = vadd.f32 %v1405, 1e-05
        %v1407 = vrsqrt.pop %v1406
        %v1408 = vmul.f32 %v1407, %v1406
        %v1409 = vmul.f32 %v1408, %v1407
        %v1410 = vmul.f32 0.5, %v1409
        %v1411 = vsub.f32 1.5, %v1410
        %v1412 = vmul.f32 %v1407, %v1411
        %vm1413 = vweird.f32 %v1406
        %vm1414 = vweird.f32 %v1407
        %vm1415 = vmor %vm1413, %vm1414
        %v1416 = vsel %vm1415, %v1407, %v1412
        %v1417 = vmul.f32 %v1400, %v1416
        %v1419 = vperm.slane %v1387, 0
        %v1421 = vmul.f32 %v1417, %v1419
        %v1423 = vperm.slane %v1388, 0
        %v1425 = vadd.f32 %v1421, %v1423
        %v1426 = vpack.c.bf16 %v1425, %v1425
        %v1427 = vld [vmem:[%s9] sm:$0xf]
        %v1428 = vld [vmem:[%s9 + $0x4] sm:$0xf]
        %v1429 = vld [vmem:[%s9 + $0x8] sm:$0xf]
        %v1430 = vld [vmem:[%s9 + $0xc] sm:$0xf]
        %v1431 = vld [vmem:[%s10] sm:$0x1]
        %v1433 = vperm.slane %v1431, 0
        %v1439 = vunpack.c.l.b16 %v1427
        %v1440 = vunpack.c.l.b16 %v1428
        %v1441 = vunpack.c.l.b16 %v1429
        %v1442 = vunpack.c.l.b16 %v1430
        %v1443 = vpack.c.b16 %v1440, %v1439
        %v1444 = vpack.c.b16 %v1442, %v1441
        %v1448 = vsel %vm1369, %v1426, 0
        %1450 = vmatpush.bf16.msra.mxu0 0
        %1451 = vmatpush.bf16.msra.mxu0 0
        %1452 = vmatpush.bf16.msra.mxu0 0
        %1453 = vmatpush.bf16.msra.mxu0 0
        %1454 = vmatpush.bf16.msra.mxu0 0
        %1455 = vmatpush.bf16.msra.mxu0 0
        %1456 = vmatpush.bf16.msra.mxu0 %v1444
        %1457 = vmatpush.bf16.msra.mxu0 %v1443
        %1458 = vmatmul.bf16.gmra.mxu0 %v1448
        %v1459 = vpop.f32.mrf.mxu0
        %v1460 = vadd.f32 %v1433, %v1459
        %v1461 = vpop.f32.mrf.mxu0
        %1462 = vdwg.mxu0
        %v1463 = vmul.f32 %v1460, %v1460
        %v1464 = vmul.f32 %v1460, %v1463
        %v1465 = vmul.f32 %v1464, 0.044715
        %v1466 = vadd.f32 %v1460, %v1465
        %v1467 = vmul.f32 %v1466, 0.7978846
        %v1468 = vtanh.pop %v1467
        %v1469 = vadd.f32 %v1468, 1.0
        %v1470 = vmul.f32 %v1469, 0.5
        %v1471 = vmul.f32 %v1460, %v1470
        %v1472 = vpack.c.bf16 %v1471, %v1471
        %v1473 = vld [vmem:[%s11] sm:$0xf]
        %v1474 = vld [vmem:[%s11 + $0x4] sm:$0xf]
        %v1475 = vld [vmem:[%s11 + $0x8] sm:$0xf]
        %v1476 = vld [vmem:[%s11 + $0xc] sm:$0xf]
        %v1477 = vld [vmem:[%s11 + $0x10] sm:$0xf]
        %v1478 = vld [vmem:[%s11 + $0x14] sm:$0xf]
        %v1479 = vld [vmem:[%s11 + $0x18] sm:$0xf]
        %v1480 = vld [vmem:[%s11 + $0x1c] sm:$0xf]
        %v1481 = vld [vmem:[%s11 + $0x20] sm:$0xf]
        %v1482 = vld [vmem:[%s11 + $0x24] sm:$0xf]
        %v1483 = vld [vmem:[%s11 + $0x28] sm:$0xf]
        %v1484 = vld [vmem:[%s11 + $0x2c] sm:$0xf]
        %v1485 = vld [vmem:[%s11 + $0x30] sm:$0xf]
        %v1486 = vld [vmem:[%s11 + $0x34] sm:$0xf]
        %v1487 = vld [vmem:[%s11 + $0x38] sm:$0xf]
        %v1488 = vld [vmem:[%s11 + $0x3c] sm:$0xf]
        %v1489 = vld [vmem:[%s12] sm:$0x1]
        %v1491 = vperm.slane %v1489, 0
        %v1509 = vunpack.c.l.b16 %v1473
        %v1510 = vunpack.c.l.b16 %v1474
        %v1511 = vunpack.c.l.b16 %v1475
        %v1512 = vunpack.c.l.b16 %v1476
        %v1513 = vunpack.c.l.b16 %v1477
        %v1514 = vunpack.c.l.b16 %v1478
        %v1515 = vunpack.c.l.b16 %v1479
        %v1516 = vunpack.c.l.b16 %v1480
        %v1517 = vunpack.c.l.b16 %v1481
        %v1518 = vunpack.c.l.b16 %v1482
        %v1519 = vunpack.c.l.b16 %v1483
        %v1520 = vunpack.c.l.b16 %v1484
        %v1521 = vunpack.c.l.b16 %v1485
        %v1522 = vunpack.c.l.b16 %v1486
        %v1523 = vunpack.c.l.b16 %v1487
        %v1524 = vunpack.c.l.b16 %v1488
        %v1525 = vpack.c.b16 %v1510, %v1509
        %v1526 = vpack.c.b16 %v1512, %v1511
        %v1527 = vpack.c.b16 %v1514, %v1513
        %v1528 = vpack.c.b16 %v1516, %v1515
        %v1529 = vpack.c.b16 %v1518, %v1517
        %v1530 = vpack.c.b16 %v1520, %v1519
        %v1531 = vpack.c.b16 %v1522, %v1521
        %v1532 = vpack.c.b16 %v1524, %v1523
        %1541 = vmatpush.bf16.msra.mxu0 %v1532
        %1542 = vmatpush.bf16.msra.mxu0 %v1531
        %1543 = vmatpush.bf16.msra.mxu0 %v1530
        %1544 = vmatpush.bf16.msra.mxu0 %v1529
        %1545 = vmatpush.bf16.msra.mxu0 %v1528
        %1546 = vmatpush.bf16.msra.mxu0 %v1527
        %1547 = vmatpush.bf16.msra.mxu0 %v1526
        %1548 = vmatpush.bf16.msra.mxu0 %v1525
        %1549 = vmatmul.bf16.gmra.mxu0 %v1472
        %v1550 = vpop.f32.mrf.mxu0
        %v1551 = vadd.f32 %v1491, %v1550
        %v1552 = vpop.f32.mrf.mxu0
        %1553 = vdwg.mxu0
        %v1554 = vadd.f32 %v1551, %v1386
        %1555 = vst.msk [vmem:[%s512] sm:$0xff] %vm1369, %v1554
        %s1556 = sand.u32 %s376, 1
        %s1557 = scalar_lea.sflag [#allocation6], %s1556
        %s1558 = sand.u32 %s376, 1
        %s1559 = smul.addr %s1558, 8
        %s1560 = scalar_lea.vmem [#allocation5], %s1559
        // Predicated region
        $region85: #{tpu_custom_call.1} parent=79 // pred_check
          %p1561 = pneg %p386
        $region86: #{tpu_custom_call.1} parent=79 // pred_check_branch
          %1563 = sbr.rel (%p1561) target = $region88
        $region87: #{tpu_custom_call.1} parent=79 // pred_region
          %1565 = vsyncadd %s1557, 0
          %s1566 = sadd.s32 %s34, %s33
          %s1567 = smul.addr %s1566, 8
          %s1568 = scalar_lea.hbm %s15, %s1567
          %s1570 = sshll.u32 %s1560, 4
          %s1571 = int_to_ptr.vmem [resolvable:$true] %s1570
          %s1572 = sshll.u32 %s1568, 4
          %s1573 = int_to_ptr.hbm [resolvable:$true] %s1572
          %1575 = dma.vmem_to_hbm [thread:$0]  %s1571, 128, %s1573, %s1557
        $region88: #{tpu_custom_call.1} parent=79 // pred_fallthru
          _
      $region80: #{tpu_custom_call.1} parent=5 // pred_fallthru
        _
      %p1576 = scmp.le.s32.totalorder 2, %s24
      // Predicated region
      $region89: #{tpu_custom_call.1} parent=5 // pred_check
        %p1577 = pneg %p1576
      $region90: #{tpu_custom_call.1} parent=5 // pred_check_branch
        %1579 = sbr.rel (%p1577) target = $region92
      $region91: #{tpu_custom_call.1} parent=5 // pred_region
        %s1580 = ssub.s32 %s24, 2
        // Predicated region
        $region93: #{tpu_custom_call.1} parent=91 // pred_check
          %p1581 = pneg %p392
        $region94: #{tpu_custom_call.1} parent=91 // pred_check_branch
          %1583 = sbr.rel (%p1581) target = $region96
        $region95: #{tpu_custom_call.1} parent=91 // pred_region
          %s1584 = sand.u32 %s377, 1
          %s1585 = scalar_lea.sflag [#allocation6], %s1584
          %s1586 = sand.u32 %s377, 1
          %s1587 = smul.addr %s1586, 8
          %s1588 = scalar_lea.vmem [#allocation5], %s1587
          %1590 = dma.done %s1585, 128
        $region96: #{tpu_custom_call.1} parent=91 // pred_fallthru
          _
      $region92: #{tpu_custom_call.1} parent=5 // pred_fallthru
        _
    $region6: #{tpu_custom_call.1} parent=1 // loop_footer
      %s28 = sadd.s32 1, %s24
    $region7: #{tpu_custom_call.1} parent=1 // loop_footer_branch
      %23 = sbr.rel target = $region3
    $region8: #{tpu_custom_call.1} parent=1 // loop_exit
      _
    %1591 = vsyncpa [#allocation6], 1
    %s1592 = scalar_lea.sflag [#allocation6], 1
    %1593 = vsyncpa %s1592, 1

</llo_original>
